<compile_context>
chip_gen: v6e
topology: v6e:2x2x1
jax: 0.10.0
libtpu: 0.0.40
codegen_flags: <defaults>
</compile_context>

<pallas_src>
import jax
import jax.numpy as jnp
from jax.experimental import pallas as pl
from jax.experimental.pallas import tpu as pltpu

_MIB = 1024 * 1024
_VMEM_CAP = 48 * _MIB  # safe below physical VMEM on v5e/v6e (128 MiB) and v7x (64 MiB)


def _round_up(v, m):
    return (v + m - 1) // m * m


def _cdiv(a, b):
    return (a + b - 1) // b


# ----------------------------------------------------------------------------- kernel
def _make_discriminator_kernel(num_hidden):
    """Fused kernel: num_hidden x (Linear + LeakyReLU) + final Linear(dim, 1)."""

    def kernel(*refs):
        # refs layout: x, (w, b) * num_hidden, w_out_row, b_out, o
        x_ref = refs[0]
        o_ref = refs[-1]
        p = refs[1:-1]

        x_f32 = x_ref[...]                         # (TILE_B, packdim) f32
        h_bf16 = x_f32.astype(jnp.bfloat16)        # in-kernel cast (no wrapper pass)
        h_f32 = x_f32
        for l in range(num_hidden):
            w_ref = p[2 * l]                       # (D_l, D_{l+1}) bf16
            b_ref = p[2 * l + 1]                   # (1, D_{l+1})   f32
            acc = jnp.dot(h_bf16, w_ref[...],
                          preferred_element_type=jnp.float32) + b_ref[...]
            acc = jnp.maximum(acc, 0.2 * acc)      # LeakyReLU(0.2)
            # Dropout(0.5): identity in eval mode.
            h_f32 = acc
            h_bf16 = acc.astype(jnp.bfloat16)      # bf16 only for the next MXU pass

        # Final Linear(dim, 1): VPU multiply + lane reduce instead of N=1 MXU pass.
        w_out = p[2 * num_hidden][...]             # (1, D_last) f32
        b_out = p[2 * num_hidden + 1][...]         # (1, 1)      f32
        out = jnp.sum(h_f32 * w_out, axis=-1, keepdims=True) + b_out
        o_ref[...] = out.astype(o_ref.dtype)

    return kernel


# ------------------------------------------------------------------- parameter caching
def prepare_discriminator_params(params, packdim, *, lane_multiple=128,
                                 weight_dtype=jnp.bfloat16):
    """Pad + cast layer parameters ONCE (hoisted out of the per-call path).

    `lane_multiple` can be raised to 256 on v6e/v7x when hidden dims are ~128
    to better fill the 256-wide MXU; 128 is native for v5e and fine for the
    typical CTGAN dims of 256.
    """
    num_hidden = len(params) - 1
    flat = []
    flops_per_row = 0
    weight_bytes = 0
    max_dim_pad = packdim

    din_real, din_pad = packdim, packdim           # x enters unpadded (K of layer 0)
    for l in range(num_hidden):
        w, b = params[l]
        assert w.shape[0] == din_real
        dout_real = w.shape[1]
        dout_pad = _round_up(dout_real, lane_multiple)
        w_p = jnp.pad(jnp.asarray(w, jnp.float32),
                      ((0, din_pad - din_real),
                       (0, dout_pad - dout_real))).astype(weight_dtype)
        b_p = jnp.pad(jnp.asarray(b, jnp.float32).reshape(1, -1),
                      ((0, 0), (0, dout_pad - dout_real)))
        flat += [w_p, b_p]
        flops_per_row += 2 * din_real * dout_real
        weight_bytes += w_p.size * w_p.dtype.itemsize + b_p.size * 4
        max_dim_pad = max(max_dim_pad, dout_pad)
        din_real, din_pad = dout_real, dout_pad

    w_out, b_out = params[-1]
    assert w_out.shape == (din_real, 1)
    w_out_row = jnp.pad(jnp.asarray(w_out, jnp.float32).T,
                        ((0, 0), (0, din_pad - din_real)))      # (1, D_last_pad)
    b_out_p = jnp.asarray(b_out, jnp.float32).reshape(1, 1)
    flat += [w_out_row, b_out_p]
    flops_per_row += 2 * din_real
    weight_bytes += w_out_row.size * 4 + 4

    return dict(flat=tuple(flat), num_hidden=num_hidden, packdim=packdim,
                flops_per_row=flops_per_row, weight_bytes=weight_bytes,
                max_dim_pad=max_dim_pad)


# ----------------------------------------------------------------------- tile selection
def _choose_tile(b_packed, packdim, max_dim_pad, weight_bytes, tile_b_max,
                 min_grid_steps):
    # Per-row VMEM cost: double-buffered f32 x rows + live f32/bf16 activations + out.
    per_row = 2 * packdim * 4 + 2 * max_dim_pad * (4 + 2) + 2 * 4
    budget = max(_VMEM_CAP - 2 * weight_bytes - 2 * _MIB, 8 * per_row)
    tb_vmem = max((budget // per_row) // 8 * 8, 8)
    # At least `min_grid_steps` grid steps so both v7x TensorCores get work.
    tb_split = _round_up(_cdiv(b_packed, max(min_grid_steps, 1)), 8)
    tb = max(8, min(_round_up(max(tile_b_max, 8), 8), tb_vmem, tb_split))
    return int(tb)


# ---------------------------------------------------------------------------- forward
def discriminator_forward(x, prepared, pack, *, tile_b_max=1024, min_grid_steps=2,
                          training=False):
    """x: (N, input_dim) f32.  `prepared` comes from prepare_discriminator_params."""
    if training:
        # TODO(synk): training-mode Dropout(0.5) needs pltpu.prng_* masking + rescale.
        raise NotImplementedError("Discriminator kernel implements eval-mode Dropout only")

    n, input_dim = x.shape
    packdim = prepared["packdim"]
    assert n % pack == 0, "batch must be divisible by pack"
    assert input_dim * pack == packdim
    x_packed = jnp.asarray(x, jnp.float32).reshape(-1, packdim)   # == torch .view
    b_packed = x_packed.shape[0]

    num_hidden = prepared["num_hidden"]
    flat = prepared["flat"]

    tb = _choose_tile(b_packed, packdim, prepared["max_dim_pad"],
                      prepared["weight_bytes"], tile_b_max, min_grid_steps)
    num_steps = _cdiv(b_packed, tb)   # ragged last tile: OOB reads unused, writes dropped

    def _build(single_buffer_weights):
        def _resident(shape):
            if single_buffer_weights:
                return pl.BlockSpec(shape, lambda i: (0, 0),
                                    pipeline_mode=pl.Buffered(1))
            return pl.BlockSpec(shape, lambda i: (0, 0))

        in_specs = [pl.BlockSpec((tb, packdim), lambda i: (i, 0))]
        in_specs += [_resident(a.shape) for a in flat]
        out_spec = pl.BlockSpec((tb, 1), lambda i: (i, 0))

        cost = pl.CostEstimate(
            flops=prepared["flops_per_row"] * b_packed,
            transcendentals=0,
            bytes_accessed=(b_packed * packdim * 4
                            + prepared["weight_bytes"] + b_packed * 4))

        # VMEM estimate: double-buffered x tile + resident weights + live activations.
        est = (2 * tb * packdim * 4
               + (1 if single_buffer_weights else 2) * prepared["weight_bytes"]
               + 2 * tb * prepared["max_dim_pad"] * (4 + 2)
               + 2 * tb * 4)
        vmem_limit = int(min(max(2 * est, 32 * _MIB), _VMEM_CAP))

        return pl.pallas_call(
            _make_discriminator_kernel(num_hidden),
            grid=(num_steps,),
            in_specs=in_specs,
            out_specs=out_spec,
            out_shape=jax.ShapeDtypeStruct((b_packed, 1), jnp.float32),
            compiler_params=pltpu.CompilerParams(
                dimension_semantics=("parallel",),
                vmem_limit_bytes=vmem_limit),
            cost_estimate=cost,
        )

    try:
        return _build(True)(x_packed, *flat)
    except Exception:
        # Fallback if this JAX build rejects single-buffered weight specs; a genuine
        # unrelated error re-raises here identically.
        return _build(False)(x_packed, *flat)


# --------------------------------------------------------------------------- reference
def _reference_forward(x, params, pack, emulate_bf16=False):
    n, input_dim = x.shape
    h = x.reshape(-1, input_dim * pack).astype(jnp.float32)
    num_hidden = len(params) - 1
    for l in range(num_hidden):
        w, b = params[l]
        lhs = h.astype(jnp.bfloat16) if emulate_bf16 else h
        rhs = w.astype(jnp.bfloat16) if emulate_bf16 else w
        a = jnp.dot(lhs, rhs, preferred_element_type=jnp.float32) + b.reshape(1, -1)
        h = jnp.where(a > 0, a, 0.2 * a)
    w, b = params[-1]
    return jnp.dot(h, w.astype(jnp.float32)) + b.reshape(1, -1)


def init_params(key, input_dim, dis_dims, pack):
    """Deterministic synthetic parameters matching the module's layer shapes."""
    params = []
    dim = input_dim * pack
    dims = list(dis_dims) + [1]
    for out_dim in dims:
        key, kw, kb = jax.random.split(key, 3)
        bound = 1.0 / jnp.sqrt(dim)
        w = jax.random.uniform(kw, (dim, out_dim), jnp.float32, -bound, bound)
        b = jax.random.uniform(kb, (out_dim,), jnp.float32, -bound, bound)
        params.append((w, b))
        dim = out_dim
    return params


if __name__ == "__main__":
    # Small shapes consistent with the module: batch=40, input_dim=16, pack=2
    # -> packdim = 32, packed batch = 20; dis_dims = (32, 32).
    batch = 40
    input_dim = 16
    pack = 2
    dis_dims = (32, 32)

    key = jax.random.PRNGKey(0)
    key, kx = jax.random.split(key)
    x = jax.random.normal(kx, (batch, input_dim), dtype=jnp.float32)
    params = init_params(key, input_dim, dis_dims, pack)

    # Weight padding/casting hoisted + cached (done once, reused across calls).
    prepared = prepare_discriminator_params(params, input_dim * pack)

    # Default tiling: b_packed=20 -> tb=16, 2 grid steps (keeps both v7x TCs busy).
    out = jax.block_until_ready(discriminator_forward(x, prepared, pack))
    assert out.shape == (batch // pack, 1), out.shape

    # Smaller tile cap exercises a 3-step ragged grid (last block partially OOB).
    out_small = jax.block_until_ready(
        discriminator_forward(x, prepared, pack, tile_b_max=8))
    assert out_small.shape == (batch // pack, 1), out_small.shape

    ref_bf16 = _reference_forward(x, params, pack, emulate_bf16=True)
    ref_f32 = _reference_forward(x, params, pack, emulate_bf16=False)
    for o in (out, out_small):
        assert jnp.allclose(o, ref_bf16, atol=1e-2, rtol=1e-2), \
            float(jnp.max(jnp.abs(o - ref_bf16)))
        assert jnp.allclose(o, ref_f32, atol=5e-2, rtol=5e-2), \
            float(jnp.max(jnp.abs(o - ref_f32)))

    print("KERNEL_OK")
</pallas_src>

<mosaic_0001>
module attributes {stable_mosaic.version = 11 : i64} {
  func.func @kernel(%arg0: i32, %arg1: memref<16x32xf32, #tpu.memory_space<vmem>>, %arg2: memref<32x128xbf16, #tpu.memory_space<vmem>>, %arg3: memref<1x128xf32, #tpu.memory_space<vmem>>, %arg4: memref<128x128xbf16, #tpu.memory_space<vmem>>, %arg5: memref<1x128xf32, #tpu.memory_space<vmem>>, %arg6: memref<1x128xf32, #tpu.memory_space<vmem>>, %arg7: memref<1x1xf32, #tpu.memory_space<vmem>>, %arg8: memref<16x1xf32, #tpu.memory_space<vmem>>) attributes {dimension_semantics = [#tpu.dimension_semantics<parallel>], iteration_bounds = array<i64: 2>, scalar_prefetch = 0 : i64, scratch_operands = 0 : i64, tpu.core_type = #tpu.core_type<tc>, window_params = [{transform_indices = @transform_0, window_bounds = array<i64: 16, 32>}, {pipeline_mode = #tpu.pipeline_mode<synchronous>, transform_indices = @transform_1, window_bounds = array<i64: 32, 128>}, {pipeline_mode = #tpu.pipeline_mode<synchronous>, transform_indices = @transform_2, window_bounds = array<i64: 1, 128>}, {pipeline_mode = #tpu.pipeline_mode<synchronous>, transform_indices = @transform_3, window_bounds = array<i64: 128, 128>}, {pipeline_mode = #tpu.pipeline_mode<synchronous>, transform_indices = @transform_4, window_bounds = array<i64: 1, 128>}, {pipeline_mode = #tpu.pipeline_mode<synchronous>, transform_indices = @transform_5, window_bounds = array<i64: 1, 128>}, {pipeline_mode = #tpu.pipeline_mode<synchronous>, transform_indices = @transform_6, window_bounds = array<i64: 1, 1>}, {transform_indices = @transform_7, window_bounds = array<i64: 16, 1>}]} {
    %c0 = arith.constant 0 : index
    %c0_0 = arith.constant 0 : index
    %0 = vector.load %arg1[%c0, %c0_0] : memref<16x32xf32, #tpu.memory_space<vmem>>, vector<16x32xf32>
    %1 = arith.truncf %0 : vector<16x32xf32> to vector<16x32xbf16>
    %c0_1 = arith.constant 0 : index
    %c0_2 = arith.constant 0 : index
    %2 = vector.load %arg2[%c0_1, %c0_2] : memref<32x128xbf16, #tpu.memory_space<vmem>>, vector<32x128xbf16>
    %cst = arith.constant dense<0.000000e+00> : vector<16x128xf32>
    %3 = tpu.matmul %1, %2, %cst {dimension_numbers = #tpu.dot_dimension_numbers<[1], [0], [0], [1], [0, 0, 1, 1], [], []>} : vector<16x32xbf16>, vector<32x128xbf16>, vector<16x128xf32> -> vector<16x128xf32>
    %c0_3 = arith.constant 0 : index
    %c0_4 = arith.constant 0 : index
    %4 = vector.load %arg3[%c0_3, %c0_4] : memref<1x128xf32, #tpu.memory_space<vmem>>, vector<1x128xf32>
    %5 = vector.broadcast %4 : vector<1x128xf32> to vector<16x128xf32>
    %6 = arith.addf %3, %5 : vector<16x128xf32>
    %cst_5 = arith.constant 2.000000e-01 : f32
    %7 = vector.broadcast %cst_5 : f32 to vector<16x128xf32>
    %8 = arith.mulf %7, %6 : vector<16x128xf32>
    %9 = arith.maximumf %6, %8 : vector<16x128xf32>
    %10 = arith.truncf %9 : vector<16x128xf32> to vector<16x128xbf16>
    %c0_6 = arith.constant 0 : index
    %c0_7 = arith.constant 0 : index
    %11 = vector.load %arg4[%c0_6, %c0_7] : memref<128x128xbf16, #tpu.memory_space<vmem>>, vector<128x128xbf16>
    %cst_8 = arith.constant dense<0.000000e+00> : vector<16x128xf32>
    %12 = tpu.matmul %10, %11, %cst_8 {dimension_numbers = #tpu.dot_dimension_numbers<[1], [0], [0], [1], [0, 0, 1, 1], [], []>} : vector<16x128xbf16>, vector<128x128xbf16>, vector<16x128xf32> -> vector<16x128xf32>
    %c0_9 = arith.constant 0 : index
    %c0_10 = arith.constant 0 : index
    %13 = vector.load %arg5[%c0_9, %c0_10] : memref<1x128xf32, #tpu.memory_space<vmem>>, vector<1x128xf32>
    %14 = vector.broadcast %13 : vector<1x128xf32> to vector<16x128xf32>
    %15 = arith.addf %12, %14 : vector<16x128xf32>
    %cst_11 = arith.constant 2.000000e-01 : f32
    %16 = vector.broadcast %cst_11 : f32 to vector<16x128xf32>
    %17 = arith.mulf %16, %15 : vector<16x128xf32>
    %18 = arith.maximumf %15, %17 : vector<16x128xf32>
    %c0_12 = arith.constant 0 : index
    %c0_13 = arith.constant 0 : index
    %19 = vector.load %arg6[%c0_12, %c0_13] : memref<1x128xf32, #tpu.memory_space<vmem>>, vector<1x128xf32>
    %c0_14 = arith.constant 0 : index
    %c0_15 = arith.constant 0 : index
    %20 = vector.load %arg7[%c0_14, %c0_15] : memref<1x1xf32, #tpu.memory_space<vmem>>, vector<1x1xf32>
    %21 = vector.broadcast %19 : vector<1x128xf32> to vector<16x128xf32>
    %22 = arith.mulf %18, %21 : vector<16x128xf32>
    %cst_16 = arith.constant dense<0.000000e+00> : vector<16xf32>
    %23 = vector.multi_reduction <add>, %22, %cst_16 [1] : vector<16x128xf32> to vector<16xf32>
    %24 = vector.shape_cast %23 : vector<16xf32> to vector<16x1xf32>
    %25 = vector.broadcast %20 : vector<1x1xf32> to vector<16x1xf32>
    %26 = arith.addf %24, %25 : vector<16x1xf32>
    %c0_17 = arith.constant 0 : index
    %c0_18 = arith.constant 0 : index
    %27 = vector.load %arg8[%c0_17, %c0_18] : memref<16x1xf32, #tpu.memory_space<vmem>>, vector<16x1xf32>
    tpu.vector_store %arg8[%c0_17, %c0_18], %26 {strides = array<i32>} : memref<16x1xf32, #tpu.memory_space<vmem>>, vector<16x1xf32>,
    return
  }
  func.func @transform_0(%arg0: i32) -> (i32, i32) {
    %c0_i32 = arith.constant 0 : i32
    %c0_i32_0 = arith.constant 0 : i32
    return %arg0, %c0_i32 : i32, i32
  }
  func.func @transform_1(%arg0: i32) -> (i32, i32) {
    %c0_i32 = arith.constant 0 : i32
    %c0_i32_0 = arith.constant 0 : i32
    %c0_i32_1 = arith.constant 0 : i32
    return %c0_i32, %c0_i32_0 : i32, i32
  }
  func.func @transform_2(%arg0: i32) -> (i32, i32) {
    %c0_i32 = arith.constant 0 : i32
    %c0_i32_0 = arith.constant 0 : i32
    %c0_i32_1 = arith.constant 0 : i32
    return %c0_i32, %c0_i32_0 : i32, i32
  }
  func.func @transform_3(%arg0: i32) -> (i32, i32) {
    %c0_i32 = arith.constant 0 : i32
    %c0_i32_0 = arith.constant 0 : i32
    %c0_i32_1 = arith.constant 0 : i32
    return %c0_i32, %c0_i32_0 : i32, i32
  }
  func.func @transform_4(%arg0: i32) -> (i32, i32) {
    %c0_i32 = arith.constant 0 : i32
    %c0_i32_0 = arith.constant 0 : i32
    %c0_i32_1 = arith.constant 0 : i32
    return %c0_i32, %c0_i32_0 : i32, i32
  }
  func.func @transform_5(%arg0: i32) -> (i32, i32) {
    %c0_i32 = arith.constant 0 : i32
    %c0_i32_0 = arith.constant 0 : i32
    %c0_i32_1 = arith.constant 0 : i32
    return %c0_i32, %c0_i32_0 : i32, i32
  }
  func.func @transform_6(%arg0: i32) -> (i32, i32) {
    %c0_i32 = arith.constant 0 : i32
    %c0_i32_0 = arith.constant 0 : i32
    %c0_i32_1 = arith.constant 0 : i32
    return %c0_i32, %c0_i32_0 : i32, i32
  }
  func.func @transform_7(%arg0: i32) -> (i32, i32) {
    %c0_i32 = arith.constant 0 : i32
    %c0_i32_0 = arith.constant 0 : i32
    return %arg0, %c0_i32 : i32, i32
  }
}

module attributes {stable_mosaic.version = 11 : i64} {
  func.func @kernel(%arg0: i32, %arg1: memref<16x32xf32, #tpu.memory_space<vmem>>, %arg2: memref<32x128xbf16, #tpu.memory_space<vmem>>, %arg3: memref<1x128xf32, #tpu.memory_space<vmem>>, %arg4: memref<128x128xbf16, #tpu.memory_space<vmem>>, %arg5: memref<1x128xf32, #tpu.memory_space<vmem>>, %arg6: memref<1x128xf32, #tpu.memory_space<vmem>>, %arg7: memref<1x1xf32, #tpu.memory_space<vmem>>, %arg8: memref<16x1xf32, #tpu.memory_space<vmem>>) attributes {dimension_semantics = [#tpu.dimension_semantics<parallel>], iteration_bounds = array<i64: 2>, scalar_prefetch = 0 : i64, scratch_operands = 0 : i64, tpu.core_type = #tpu.core_type<tc>, window_params = [{transform_indices = @transform_0, window_bounds = array<i64: 16, 32>}, {pipeline_mode = #tpu.pipeline_mode<synchronous>, transform_indices = @transform_1, window_bounds = array<i64: 32, 128>}, {pipeline_mode = #tpu.pipeline_mode<synchronous>, transform_indices = @transform_2, window_bounds = array<i64: 1, 128>}, {pipeline_mode = #tpu.pipeline_mode<synchronous>, transform_indices = @transform_3, window_bounds = array<i64: 128, 128>}, {pipeline_mode = #tpu.pipeline_mode<synchronous>, transform_indices = @transform_4, window_bounds = array<i64: 1, 128>}, {pipeline_mode = #tpu.pipeline_mode<synchronous>, transform_indices = @transform_5, window_bounds = array<i64: 1, 128>}, {pipeline_mode = #tpu.pipeline_mode<synchronous>, transform_indices = @transform_6, window_bounds = array<i64: 1, 1>}, {transform_indices = @transform_7, window_bounds = array<i64: 16, 1>}]} {
    %c0 = arith.constant 0 : index
    %c0_0 = arith.constant 0 : index
    %0 = vector.load %arg1[%c0, %c0_0] : memref<16x32xf32, #tpu.memory_space<vmem>>, vector<16x32xf32>
    %1 = arith.truncf %0 : vector<16x32xf32> to vector<16x32xbf16>
    %c0_1 = arith.constant 0 : index
    %c0_2 = arith.constant 0 : index
    %2 = vector.load %arg2[%c0_1, %c0_2] : memref<32x128xbf16, #tpu.memory_space<vmem>>, vector<32x128xbf16>
    %cst = arith.constant dense<0.000000e+00> : vector<16x128xf32>
    %3 = tpu.matmul %1, %2, %cst {dimension_numbers = #tpu.dot_dimension_numbers<[1], [0], [0], [1], [0, 0, 1, 1], [], []>} : vector<16x32xbf16>, vector<32x128xbf16>, vector<16x128xf32> -> vector<16x128xf32>
    %c0_3 = arith.constant 0 : index
    %c0_4 = arith.constant 0 : index
    %4 = vector.load %arg3[%c0_3, %c0_4] : memref<1x128xf32, #tpu.memory_space<vmem>>, vector<1x128xf32>
    %5 = vector.broadcast %4 : vector<1x128xf32> to vector<16x128xf32>
    %6 = arith.addf %3, %5 : vector<16x128xf32>
    %cst_5 = arith.constant 2.000000e-01 : f32
    %7 = vector.broadcast %cst_5 : f32 to vector<16x128xf32>
    %8 = arith.mulf %7, %6 : vector<16x128xf32>
    %9 = arith.maximumf %6, %8 : vector<16x128xf32>
    %10 = arith.truncf %9 : vector<16x128xf32> to vector<16x128xbf16>
    %c0_6 = arith.constant 0 : index
    %c0_7 = arith.constant 0 : index
    %11 = vector.load %arg4[%c0_6, %c0_7] : memref<128x128xbf16, #tpu.memory_space<vmem>>, vector<128x128xbf16>
    %cst_8 = arith.constant dense<0.000000e+00> : vector<16x128xf32>
    %12 = tpu.matmul %10, %11, %cst_8 {dimension_numbers = #tpu.dot_dimension_numbers<[1], [0], [0], [1], [0, 0, 1, 1], [], []>} : vector<16x128xbf16>, vector<128x128xbf16>, vector<16x128xf32> -> vector<16x128xf32>
    %c0_9 = arith.constant 0 : index
    %c0_10 = arith.constant 0 : index
    %13 = vector.load %arg5[%c0_9, %c0_10] : memref<1x128xf32, #tpu.memory_space<vmem>>, vector<1x128xf32>
    %14 = vector.broadcast %13 : vector<1x128xf32> to vector<16x128xf32>
    %15 = arith.addf %12, %14 : vector<16x128xf32>
    %cst_11 = arith.constant 2.000000e-01 : f32
    %16 = vector.broadcast %cst_11 : f32 to vector<16x128xf32>
    %17 = arith.mulf %16, %15 : vector<16x128xf32>
    %18 = arith.maximumf %15, %17 : vector<16x128xf32>
    %c0_12 = arith.constant 0 : index
    %c0_13 = arith.constant 0 : index
    %19 = vector.load %arg6[%c0_12, %c0_13] : memref<1x128xf32, #tpu.memory_space<vmem>>, vector<1x128xf32>
    %c0_14 = arith.constant 0 : index
    %c0_15 = arith.constant 0 : index
    %20 = vector.load %arg7[%c0_14, %c0_15] : memref<1x1xf32, #tpu.memory_space<vmem>>, vector<1x1xf32>
    %21 = vector.broadcast %19 : vector<1x128xf32> to vector<16x128xf32>
    %22 = arith.mulf %18, %21 : vector<16x128xf32>
    %cst_16 = arith.constant dense<0.000000e+00> : vector<16xf32>
    %23 = vector.multi_reduction <add>, %22, %cst_16 [1] : vector<16x128xf32> to vector<16xf32>
    %24 = vector.shape_cast %23 : vector<16xf32> to vector<16x1xf32>
    %25 = vector.broadcast %20 : vector<1x1xf32> to vector<16x1xf32>
    %26 = arith.addf %24, %25 : vector<16x1xf32>
    %c0_17 = arith.constant 0 : index
    %c0_18 = arith.constant 0 : index
    %27 = vector.load %arg8[%c0_17, %c0_18] : memref<16x1xf32, #tpu.memory_space<vmem>>, vector<16x1xf32>
    tpu.vector_store %arg8[%c0_17, %c0_18], %26 {strides = array<i32>} : memref<16x1xf32, #tpu.memory_space<vmem>>, vector<16x1xf32>,
    return
  }
  func.func @transform_0(%arg0: i32) -> (i32, i32) {
    %c0_i32 = arith.constant 0 : i32
    %c0_i32_0 = arith.constant 0 : i32
    return %arg0, %c0_i32 : i32, i32
  }
  func.func @transform_1(%arg0: i32) -> (i32, i32) {
    %c0_i32 = arith.constant 0 : i32
    %c0_i32_0 = arith.constant 0 : i32
    %c0_i32_1 = arith.constant 0 : i32
    return %c0_i32, %c0_i32_0 : i32, i32
  }
  func.func @transform_2(%arg0: i32) -> (i32, i32) {
    %c0_i32 = arith.constant 0 : i32
    %c0_i32_0 = arith.constant 0 : i32
    %c0_i32_1 = arith.constant 0 : i32
    return %c0_i32, %c0_i32_0 : i32, i32
  }
  func.func @transform_3(%arg0: i32) -> (i32, i32) {
    %c0_i32 = arith.constant 0 : i32
    %c0_i32_0 = arith.constant 0 : i32
    %c0_i32_1 = arith.constant 0 : i32
    return %c0_i32, %c0_i32_0 : i32, i32
  }
  func.func @transform_4(%arg0: i32) -> (i32, i32) {
    %c0_i32 = arith.constant 0 : i32
    %c0_i32_0 = arith.constant 0 : i32
    %c0_i32_1 = arith.constant 0 : i32
    return %c0_i32, %c0_i32_0 : i32, i32
  }
  func.func @transform_5(%arg0: i32) -> (i32, i32) {
    %c0_i32 = arith.constant 0 : i32
    %c0_i32_0 = arith.constant 0 : i32
    %c0_i32_1 = arith.constant 0 : i32
    return %c0_i32, %c0_i32_0 : i32, i32
  }
  func.func @transform_6(%arg0: i32) -> (i32, i32) {
    %c0_i32 = arith.constant 0 : i32
    %c0_i32_0 = arith.constant 0 : i32
    %c0_i32_1 = arith.constant 0 : i32
    return %c0_i32, %c0_i32_0 : i32, i32
  }
  func.func @transform_7(%arg0: i32) -> (i32, i32) {
    %c0_i32 = arith.constant 0 : i32
    %c0_i32_0 = arith.constant 0 : i32
    return %arg0, %c0_i32 : i32, i32
  }
}

</mosaic_0001>

<llo_original>
// kernel: tpu_custom_call.1
$region0: #{tpu_custom_call.1}
  #allocation0 [shape = 'u32[]', space=smem, size = 0x4, offset = 0x4, fixed_abs, tag = 'smem constant byte address 0x4 - core index']
  #allocation1 [shape = 'u32[144,128]{1,0:T(1,128)}', space=vmem, size = 0x12000, scoped, tag = 'internal scratch']
  #allocation2 [shape = 'f32[1,1]{1,0:T(1,128)S(1)}', space=vmem, size = 0x200, scoped, tag = 'scoped memory for tpu_custom_call.1']
  %s0 = inlined_call_operand.hbm [shape: f32[20,32], index: 0, kind: input, shape index: {}]
  %s1 = inlined_call_operand.hbm [shape: bf16[32,128], index: 1, kind: input, shape index: {}]
  %s2 = inlined_call_operand.vmem [shape: f32[1,128], index: 2, kind: input, shape index: {}]
  %s3 = inlined_call_operand.hbm [shape: bf16[128,128], index: 3, kind: input, shape index: {}]
  %s4 = inlined_call_operand.vmem [shape: f32[1,128], index: 4, kind: input, shape index: {}]
  %s5 = inlined_call_operand.vmem [shape: f32[1,128], index: 5, kind: input, shape index: {}]
  %s6 = inlined_call_operand.<no memory space> [shape: f32[1,1], index: 6, kind: input, shape index: {}]
  %s7 = inlined_call_operand.vmem [shape: f32[20,1], index: 7, kind: output, shape index: {}]
  %s8 = sld [smem:[#allocation0]]
  $region121: #{tpu_custom_call.1} parent=0
    _
  %s10 = ssub.s32 1, %s8
  %s11 = scalar_select 0, %s10, %s8
  %v12 = vstv %s6
  %13 = vst [vmem:[#allocation2] sm:$0x1] %v12
  $region1: #{tpu_custom_call.1} parent=0
    #allocation3 [shape = 'u8[16384]{0}', space=vmem, size = 0x4000, scoped, tag = 'input window, operand 0']
    #allocation4 [shape = 's32[2]{0}', space=sflag, size = 0x8, scoped, tag = 'scoped memory for tpu_custom_call.1']
    #allocation5 [shape = 'u8[8192]{0}', space=vmem, size = 0x2000, scoped, tag = 'input window, operand 1, single buffered']
    #allocation6 [shape = 's32[1]{0}', space=sflag, size = 0x4, scoped, tag = 'scoped memory for tpu_custom_call.1']
    #allocation7 [shape = 'u8[32768]{0}', space=vmem, size = 0x8000, scoped, tag = 'input window, operand 3, single buffered']
    #allocation8 [shape = 'u8[16384]{0}', space=vmem, size = 0x4000, scoped, tag = 'output window, operand 0']
    %14 = vsyncpa [#allocation4], 0
    %s15 = scalar_lea.sflag [#allocation4], 1
    %16 = vsyncpa %s15, 0
    %17 = vsyncpa [#allocation6], 0
    loop: start=0, step=1, limit=4
    $region2: #{tpu_custom_call.1} parent=1 // loop_pre_header
      _
    $region3: #{tpu_custom_call.1} parent=1 // loop_header
      %s19 = sphi 0, %s23
      %p20 = scmp.ge.s32.totalorder %s19, 4
      %s29 = sphi 0, %s31
      %s32 = sphi 0, %s29
      %s33 = sphi 0, %s32
      %s49 = sphi 0, %s33
      %s53 = sphi 0, %s53
      %s55 = sphi 0, %s53
      %s56 = sphi 0, %s55
      %s70 = sphi 0, %s56
      %s74 = sphi 0, %s74
      %s76 = sphi 0, %s74
      %s77 = sphi 0, %s76
      %s91 = sphi 0, %s77
      %s95 = sphi 0, %s95
      %s97 = sphi 0, %s95
      %s98 = sphi 0, %s97
      %s112 = sphi 0, %s98
      %s116 = sphi 0, %s116
      %s118 = sphi 0, %s116
      %s119 = sphi 0, %s118
      %s133 = sphi 0, %s119
      %s137 = sphi 0, %s137
      %s139 = sphi 0, %s137
      %s140 = sphi 0, %s139
      %s154 = sphi 0, %s140
      %s158 = sphi 0, %s158
      %s160 = sphi 0, %s158
      %s161 = sphi 0, %s160
      %s175 = sphi 0, %s161
      %s181 = sphi 0, %s183
      %s184 = sphi 0, %s181
      %s185 = sphi 0, %s184
      %s201 = sphi 0, %s185
    $region4: #{tpu_custom_call.1} parent=1 // loop_header_branch
      %22 = sbr.rel (%p20) target = $region8
    $region5: #{tpu_custom_call.1} parent=1 // loop_body
      %s24 = ssub.s32 %s19, 1
      %s25 = ssub.s32 %s19, 2
      %s26 = sadd.s32 %s19, 1
      %s27 = ssub.s32 %s19, %s26
      %p28 = scmp.eq.s32.totalorder %s27, 0
      %s30 = sadd.s32 %s29, 1
      %s31 = scalar_select %p28, %s29, %s30
      %p34 = pneg %p28
      %p35 = scmp.eq.s32.totalorder %s19, 1
      %p36 = por %p34, %p35
      %p37 = scmp.ne.s32.totalorder %s29, %s32
      %p38 = scmp.eq.s32.totalorder %s19, 0
      %p39 = por %p37, %p38
      %p40 = scmp.ne.s32.totalorder %s29, %s32
      %p41 = scmp.eq.s32.totalorder %s24, 1
      %p42 = por %p40, %p41
      %p43 = scmp.ne.s32.totalorder %s32, %s33
      %p44 = scmp.eq.s32.totalorder %s24, 0
      %p45 = por %p43, %p44
      %p46 = scmp.ne.s32.totalorder %s32, %s33
      %p47 = scmp.eq.s32.totalorder %s25, 1
      %p48 = por %p46, %p47
      %p50 = scmp.ne.s32.totalorder %s33, %s49
      %p51 = scmp.eq.s32.totalorder %s25, 0
      %p52 = por %p50, %p51
      %s54 = sadd.s32 %s53, 1
      %p57 = scmp.eq.s32.totalorder %s19, 1
      %p58 = scmp.ne.s32.totalorder %s53, %s55
      %p59 = scmp.eq.s32.totalorder %s19, 0
      %p60 = por %p58, %p59
      %p61 = scmp.ne.s32.totalorder %s53, %s55
      %p62 = scmp.eq.s32.totalorder %s24, 1
      %p63 = por %p61, %p62
      %p64 = scmp.ne.s32.totalorder %s55, %s56
      %p65 = scmp.eq.s32.totalorder %s24, 0
      %p66 = por %p64, %p65
      %p67 = scmp.ne.s32.totalorder %s55, %s56
      %p68 = scmp.eq.s32.totalorder %s25, 1
      %p69 = por %p67, %p68
      %p71 = scmp.ne.s32.totalorder %s56, %s70
      %p72 = scmp.eq.s32.totalorder %s25, 0
      %p73 = por %p71, %p72
      %s75 = sadd.s32 %s74, 1
      %p78 = scmp.eq.s32.totalorder %s19, 1
      %p79 = scmp.ne.s32.totalorder %s74, %s76
      %p80 = scmp.eq.s32.totalorder %s19, 0
      %p81 = por %p79, %p80
      %p82 = scmp.ne.s32.totalorder %s74, %s76
      %p83 = scmp.eq.s32.totalorder %s24, 1
      %p84 = por %p82, %p83
      %p85 = scmp.ne.s32.totalorder %s76, %s77
      %p86 = scmp.eq.s32.totalorder %s24, 0
      %p87 = por %p85, %p86
      %p88 = scmp.ne.s32.totalorder %s76, %s77
      %p89 = scmp.eq.s32.totalorder %s25, 1
      %p90 = por %p88, %p89
      %p92 = scmp.ne.s32.totalorder %s77, %s91
      %p93 = scmp.eq.s32.totalorder %s25, 0
      %p94 = por %p92, %p93
      %s96 = sadd.s32 %s95, 1
      %p99 = scmp.eq.s32.totalorder %s19, 1
      %p100 = scmp.ne.s32.totalorder %s95, %s97
      %p101 = scmp.eq.s32.totalorder %s19, 0
      %p102 = por %p100, %p101
      %p103 = scmp.ne.s32.totalorder %s95, %s97
      %p104 = scmp.eq.s32.totalorder %s24, 1
      %p105 = por %p103, %p104
      %p106 = scmp.ne.s32.totalorder %s97, %s98
      %p107 = scmp.eq.s32.totalorder %s24, 0
      %p108 = por %p106, %p107
      %p109 = scmp.ne.s32.totalorder %s97, %s98
      %p110 = scmp.eq.s32.totalorder %s25, 1
      %p111 = por %p109, %p110
      %p113 = scmp.ne.s32.totalorder %s98, %s112
      %p114 = scmp.eq.s32.totalorder %s25, 0
      %p115 = por %p113, %p114
      %s117 = sadd.s32 %s116, 1
      %p120 = scmp.eq.s32.totalorder %s19, 1
      %p121 = scmp.ne.s32.totalorder %s116, %s118
      %p122 = scmp.eq.s32.totalorder %s19, 0
      %p123 = por %p121, %p122
      %p124 = scmp.ne.s32.totalorder %s116, %s118
      %p125 = scmp.eq.s32.totalorder %s24, 1
      %p126 = por %p124, %p125
      %p127 = scmp.ne.s32.totalorder %s118, %s119
      %p128 = scmp.eq.s32.totalorder %s24, 0
      %p129 = por %p127, %p128
      %p130 = scmp.ne.s32.totalorder %s118, %s119
      %p131 = scmp.eq.s32.totalorder %s25, 1
      %p132 = por %p130, %p131
      %p134 = scmp.ne.s32.totalorder %s119, %s133
      %p135 = scmp.eq.s32.totalorder %s25, 0
      %p136 = por %p134, %p135
      %s138 = sadd.s32 %s137, 1
      %p141 = scmp.eq.s32.totalorder %s19, 1
      %p142 = scmp.ne.s32.totalorder %s137, %s139
      %p143 = scmp.eq.s32.totalorder %s19, 0
      %p144 = por %p142, %p143
      %p145 = scmp.ne.s32.totalorder %s137, %s139
      %p146 = scmp.eq.s32.totalorder %s24, 1
      %p147 = por %p145, %p146
      %p148 = scmp.ne.s32.totalorder %s139, %s140
      %p149 = scmp.eq.s32.totalorder %s24, 0
      %p150 = por %p148, %p149
      %p151 = scmp.ne.s32.totalorder %s139, %s140
      %p152 = scmp.eq.s32.totalorder %s25, 1
      %p153 = por %p151, %p152
      %p155 = scmp.ne.s32.totalorder %s140, %s154
      %p156 = scmp.eq.s32.totalorder %s25, 0
      %p157 = por %p155, %p156
      %s159 = sadd.s32 %s158, 1
      %p162 = scmp.eq.s32.totalorder %s19, 1
      %p163 = scmp.ne.s32.totalorder %s158, %s160
      %p164 = scmp.eq.s32.totalorder %s19, 0
      %p165 = por %p163, %p164
      %p166 = scmp.ne.s32.totalorder %s158, %s160
      %p167 = scmp.eq.s32.totalorder %s24, 1
      %p168 = por %p166, %p167
      %p169 = scmp.ne.s32.totalorder %s160, %s161
      %p170 = scmp.eq.s32.totalorder %s24, 0
      %p171 = por %p169, %p170
      %p172 = scmp.ne.s32.totalorder %s160, %s161
      %p173 = scmp.eq.s32.totalorder %s25, 1
      %p174 = por %p172, %p173
      %p176 = scmp.ne.s32.totalorder %s161, %s175
      %p177 = scmp.eq.s32.totalorder %s25, 0
      %p178 = por %p176, %p177
      %s179 = ssub.s32 %s19, %s26
      %p180 = scmp.eq.s32.totalorder %s179, 0
      %s182 = sadd.s32 %s181, 1
      %s183 = scalar_select %p180, %s181, %s182
      %p186 = pneg %p180
      %p187 = scmp.eq.s32.totalorder %s19, 1
      %p188 = por %p186, %p187
      %p189 = scmp.ne.s32.totalorder %s181, %s184
      %p190 = scmp.eq.s32.totalorder %s19, 0
      %p191 = por %p189, %p190
      %p192 = scmp.ne.s32.totalorder %s181, %s184
      %p193 = scmp.eq.s32.totalorder %s24, 1
      %p194 = por %p192, %p193
      %p195 = scmp.ne.s32.totalorder %s184, %s185
      %p196 = scmp.eq.s32.totalorder %s24, 0
      %p197 = por %p195, %p196
      %p198 = scmp.ne.s32.totalorder %s184, %s185
      %p199 = scmp.eq.s32.totalorder %s25, 1
      %p200 = por %p198, %p199
      %p202 = scmp.ne.s32.totalorder %s185, %s201
      %p203 = scmp.eq.s32.totalorder %s25, 0
      %p204 = por %p202, %p203
      %p205 = scmp.le.s32.totalorder 1, %s19
      %p206 = scmp.lt.s32.totalorder %s19, 3
      %p207 = pnand %p205, %p206
      %p208 = pneg %p207
      // Predicated region
      $region9: #{tpu_custom_call.1} parent=5 // pred_check
        _
      $region10: #{tpu_custom_call.1} parent=5 // pred_check_branch
        %210 = sbr.rel (%p207) target = $region12
      $region11: #{tpu_custom_call.1} parent=5 // pred_region
        %s211 = ssub.s32 %s19, 1
        // Predicated region
        $region13: #{tpu_custom_call.1} parent=11 // pred_check
          %p212 = pneg %p66
        $region14: #{tpu_custom_call.1} parent=11 // pred_check_branch
          %214 = sbr.rel (%p212) target = $region16
        $region15: #{tpu_custom_call.1} parent=11 // pred_region
          %s216 = ssub.s32 256, 256
          %217 = vsyncadd [#allocation6], %s216
          %s218 = sshll.u32 [#allocation5], 4
          %s219 = int_to_ptr.vmem [resolvable:$true] %s218
          %224 = dma.hbm_to_vmem [thread:$0]  %s1, 256, %s219, [#allocation6], 64, 64, 4
        $region16: #{tpu_custom_call.1} parent=11 // pred_fallthru
          _
        // Predicated region
        $region17: #{tpu_custom_call.1} parent=11 // pred_check
          %p225 = pneg %p87
        $region18: #{tpu_custom_call.1} parent=11 // pred_check_branch
          %227 = sbr.rel (%p225) target = $region20
        $region19: #{tpu_custom_call.1} parent=11 // pred_region
          _
        $region20: #{tpu_custom_call.1} parent=11 // pred_fallthru
          _
        // Predicated region
        $region21: #{tpu_custom_call.1} parent=11 // pred_check
          %p228 = pneg %p108
        $region22: #{tpu_custom_call.1} parent=11 // pred_check_branch
          %230 = sbr.rel (%p228) target = $region24
        $region23: #{tpu_custom_call.1} parent=11 // pred_region
          %s232 = ssub.s32 1024, 1024
          %233 = vsyncadd [#allocation6], %s232
          %s234 = sshll.u32 [#allocation7], 4
          %s235 = int_to_ptr.vmem [resolvable:$true] %s234
          %240 = dma.hbm_to_vmem [thread:$0]  %s3, 1024, %s235, [#allocation6], 64, 64, 4
        $region24: #{tpu_custom_call.1} parent=11 // pred_fallthru
          _
        // Predicated region
        $region25: #{tpu_custom_call.1} parent=11 // pred_check
          %p241 = pneg %p129
        $region26: #{tpu_custom_call.1} parent=11 // pred_check_branch
          %243 = sbr.rel (%p241) target = $region28
        $region27: #{tpu_custom_call.1} parent=11 // pred_region
          _
        $region28: #{tpu_custom_call.1} parent=11 // pred_fallthru
          _
        // Predicated region
        $region29: #{tpu_custom_call.1} parent=11 // pred_check
          %p244 = pneg %p150
        $region30: #{tpu_custom_call.1} parent=11 // pred_check_branch
          %246 = sbr.rel (%p244) target = $region32
        $region31: #{tpu_custom_call.1} parent=11 // pred_region
          _
        $region32: #{tpu_custom_call.1} parent=11 // pred_fallthru
          _
        // Predicated region
        $region33: #{tpu_custom_call.1} parent=11 // pred_check
          %p247 = pneg %p171
        $region34: #{tpu_custom_call.1} parent=11 // pred_check_branch
          %249 = sbr.rel (%p247) target = $region36
        $region35: #{tpu_custom_call.1} parent=11 // pred_region
          _
        $region36: #{tpu_custom_call.1} parent=11 // pred_fallthru
          _
      $region12: #{tpu_custom_call.1} parent=5 // pred_fallthru
        _
      %p250 = scmp.lt.s32.totalorder %s19, 2
      // Predicated region
      $region37: #{tpu_custom_call.1} parent=5 // pred_check
        %p251 = pneg %p250
      $region38: #{tpu_custom_call.1} parent=5 // pred_check_branch
        %253 = sbr.rel (%p251) target = $region40
      $region39: #{tpu_custom_call.1} parent=5 // pred_region
        // Predicated region
        $region41: #{tpu_custom_call.1} parent=39 // pred_check
          %p254 = pneg %p39
        $region42: #{tpu_custom_call.1} parent=39 // pred_check_branch
          %256 = sbr.rel (%p254) target = $region44
        $region43: #{tpu_custom_call.1} parent=39 // pred_region
          %s257 = sand.u32 %s29, 1
          %s258 = scalar_lea.sflag [#allocation4], %s257
          %s259 = sand.u32 %s29, 1
          %s260 = smul.addr %s259, 16
          %s261 = scalar_lea.vmem [#allocation3], %s260
          %s262 = smul.u32 2, %s19
          %s263 = ssub.s32 3, %s262
          %p264 = scmp.lt.s32.totalorder %s263, 2
          %s265 = scalar_select %p264, %s263, 2
          %s266 = smul.u32 128, %s265
          %s268 = ssub.s32 256, %s266
          %269 = vsyncadd %s258, %s268
          %p270 = scmp.ne.s32.totalorder 0, %s266
          %s271 = smul.addr %s262, 128
          %s272 = scalar_lea.hbm %s0, %s271
          %s273 = smul.u32 8, %s265
          %s274 = sshll.u32 %s261, 4
          %s275 = int_to_ptr.vmem [resolvable:$true] %s274
          %s276 = sshll.u32 %s273, 4
          %280 = dma.hbm_to_vmem [thread:$0]  (%p270), %s272, %s276, %s275, %s258, 128, 128, 8
        $region44: #{tpu_custom_call.1} parent=39 // pred_fallthru
          _
      $region40: #{tpu_custom_call.1} parent=5 // pred_fallthru
        _
      %p281 = scmp.le.s32.totalorder 1, %s19
      %p282 = scmp.lt.s32.totalorder %s19, 3
      %p283 = pnand %p281, %p282
      %p284 = pneg %p283
      // Predicated region
      $region45: #{tpu_custom_call.1} parent=5 // pred_check
        _
      $region46: #{tpu_custom_call.1} parent=5 // pred_check_branch
        %286 = sbr.rel (%p283) target = $region48
      $region47: #{tpu_custom_call.1} parent=5 // pred_region
        %s287 = ssub.s32 %s19, 1
        %s288 = sand.u32 %s32, 1
        %s289 = scalar_lea.sflag [#allocation4], %s288
        %s290 = sand.u32 %s32, 1
        %s291 = smul.addr %s290, 16
        %s292 = scalar_lea.vmem [#allocation3], %s291
        // Predicated region
        $region49: #{tpu_custom_call.1} parent=47 // pred_check
          %p293 = pneg %p45
        $region50: #{tpu_custom_call.1} parent=47 // pred_check_branch
          %295 = sbr.rel (%p293) target = $region52
        $region51: #{tpu_custom_call.1} parent=47 // pred_region
          %296 = dma.done %s289, 256
        $region52: #{tpu_custom_call.1} parent=47 // pred_fallthru
          _
        // Predicated region
        $region53: #{tpu_custom_call.1} parent=47 // pred_check
          %p297 = pneg %p66
        $region54: #{tpu_custom_call.1} parent=47 // pred_check_branch
          %299 = sbr.rel (%p297) target = $region56
        $region55: #{tpu_custom_call.1} parent=47 // pred_region
          %300 = dma.done [#allocation6], 256
        $region56: #{tpu_custom_call.1} parent=47 // pred_fallthru
          _
        // Predicated region
        $region57: #{tpu_custom_call.1} parent=47 // pred_check
          %p301 = pneg %p108
        $region58: #{tpu_custom_call.1} parent=47 // pred_check_branch
          %303 = sbr.rel (%p301) target = $region60
        $region59: #{tpu_custom_call.1} parent=47 // pred_region
          %304 = dma.done [#allocation6], 1024
        $region60: #{tpu_custom_call.1} parent=47 // pred_fallthru
          _
        %s305 = sand.u32 %s32, 1
        %s306 = scalar_lea.sflag [#allocation4], %s305
        %s307 = sand.u32 %s32, 1
        %s308 = smul.addr %s307, 16
        %s309 = scalar_lea.vmem [#allocation3], %s308
        %p310 = pneg %p45
        %p311 = pneg %p42
        %p312 = pneg %p66
        %p313 = pneg %p63
        %p314 = pneg %p87
        %p315 = pneg %p84
        %p316 = pneg %p108
        %p317 = pneg %p105
        %p318 = pneg %p129
        %p319 = pneg %p126
        %p320 = pneg %p150
        %p321 = pneg %p147
        %p322 = pneg %p171
        %p323 = pneg %p168
        %p324 = pneg %p197
        %p325 = pneg %p194
        %s326 = sand.u32 %s184, 1
        %s327 = sand.u32 %s184, 1
        %s328 = smul.addr %s327, 16
        %s329 = scalar_lea.vmem [#allocation8], %s328
        %s330 = smul.u32 2, %s24
        %s331 = ssub.s32 3, %s330
        %p332 = scmp.lt.s32.totalorder %s331, 2
        %s333 = scalar_select %p332, %s331, 2
        %s334 = smul.u32 128, %s333
        %s335 = smul.u32 2, %s24
        %s336 = ssub.s32 3, %s335
        %p337 = scmp.lt.s32.totalorder %s336, 2
        %s338 = scalar_select %p337, %s336, 2
        %s339 = smul.u32 128, %s338
        %v341 = vld [vmem:[%s292] sm:$0xff]
        %v342 = vld [vmem:[%s292 + $0x8] sm:$0xff]
        %v343 = vpack.c.bf16 %v342, %v341
        %v344 = vld [vmem:[#allocation5] sm:$0xf]
        %v345 = vld [vmem:[#allocation5 + $0x4] sm:$0xf]
        %v346 = vld [vmem:[#allocation5 + $0x8] sm:$0xf]
        %v347 = vld [vmem:[#allocation5 + $0xc] sm:$0xf]
        %v348 = vld [vmem:[%s2] sm:$0x1]
        %v350 = vlaneseq
        %v351 = vshrl.u32 %v350, 7
        %v352 = vsub.s32 0, %v351
        %v353 = vrot.slane %v348, %v352
        %v359 = vunpack.c.l.b16 %v344
        %v360 = vunpack.c.l.b16 %v345
        %v361 = vunpack.c.l.b16 %v346
        %v362 = vunpack.c.l.b16 %v347
        %v363 = vpack.c.b16 %v360, %v359
        %v364 = vpack.c.b16 %v362, %v361
        %vm367 = vcmask 261120
        %v369 = vsel %vm367, %v343, 0
        %371 = vmatprep.subr.bf16.mxu0 0
        %372 = vmatpush1.bf16.msra.mxu0 0
        %373 = vmatprep.subr.bf16.mxu0 0
        %374 = vmatpush1.bf16.msra.mxu0 0
        %375 = vmatprep.subr.bf16.mxu0 0
        %376 = vmatpush1.bf16.msra.mxu0 0
        %377 = vmatprep.subr.bf16.mxu0 0
        %378 = vmatpush1.bf16.msra.mxu0 0
        %379 = vmatprep.subr.bf16.mxu0 0
        %380 = vmatpush1.bf16.msra.mxu0 0
        %381 = vmatprep.subr.bf16.mxu0 0
        %382 = vmatpush1.bf16.msra.mxu0 0
        %383 = vmatprep.subr.bf16.mxu0 0
        %384 = vmatpush1.bf16.msra.mxu0 %v364
        %385 = vmatprep.subr.bf16.mxu0 0
        %386 = vmatpush1.bf16.msra.mxu0 %v363
        %387 = vmatprep.subr.bf16.mxu0 0
        %388 = vmatpush2.bf16.msra.mxu0 0
        %389 = vmatprep.subr.bf16.mxu0 0
        %390 = vmatpush2.bf16.msra.mxu0 0
        %391 = vmatprep.subr.bf16.mxu0 0
        %392 = vmatpush2.bf16.msra.mxu0 0
        %393 = vmatprep.subr.bf16.mxu0 0
        %394 = vmatpush2.bf16.msra.mxu0 0
        %395 = vmatprep.subr.bf16.mxu0 0
        %396 = vmatpush2.bf16.msra.mxu0 0
        %397 = vmatprep.subr.bf16.mxu0 0
        %398 = vmatpush2.bf16.msra.mxu0 0
        %399 = vmatprep.subr.bf16.mxu0 0
        %400 = vmatpush2.bf16.msra.mxu0 0
        %401 = vmatprep.subr.bf16.mxu0 0
        %402 = vmatpush2.bf16.msra.mxu0 0
        %403 = vmatprep.mubr.bf16.mxu0 0
        %404 = vmatmul.mubr.bf16.gmra.mxu0 %v369
        %v405 = vpop.f32.mrf.mxu0
        %v406 = vadd.f32 %v353, %v405
        %v407 = vpop.f32.mrf.mxu0
        %v408 = vpop.f32.mrf.mxu0
        %v409 = vadd.f32 %v353, %v408
        %v410 = vpop.f32.mrf.mxu0
        %411 = vdwg.mxu0
        %v412 = vmul.f32 %v406, 0.2
        %v413 = vmul.f32 %v409, 0.2
        %v414 = vmax.f32 %v406, %v412
        %v415 = vmax.f32 %v409, %v413
        %v416 = vpack.c.bf16 %v415, %v414
        %v417 = vld [vmem:[#allocation7] sm:$0xf]
        %v418 = vld [vmem:[#allocation7 + $0x4] sm:$0xf]
        %v419 = vld [vmem:[#allocation7 + $0x8] sm:$0xf]
        %v420 = vld [vmem:[#allocation7 + $0xc] sm:$0xf]
        %v421 = vld [vmem:[#allocation7 + $0x10] sm:$0xf]
        %v422 = vld [vmem:[#allocation7 + $0x14] sm:$0xf]
        %v423 = vld [vmem:[#allocation7 + $0x18] sm:$0xf]
        %v424 = vld [vmem:[#allocation7 + $0x1c] sm:$0xf]
        %v425 = vld [vmem:[#allocation7 + $0x20] sm:$0xf]
        %v426 = vld [vmem:[#allocation7 + $0x24] sm:$0xf]
        %v427 = vld [vmem:[#allocation7 + $0x28] sm:$0xf]
        %v428 = vld [vmem:[#allocation7 + $0x2c] sm:$0xf]
        %v429 = vld [vmem:[#allocation7 + $0x30] sm:$0xf]
        %v430 = vld [vmem:[#allocation7 + $0x34] sm:$0xf]
        %v431 = vld [vmem:[#allocation7 + $0x38] sm:$0xf]
        %v432 = vld [vmem:[#allocation7 + $0x3c] sm:$0xf]
        %v433 = vld [vmem:[%s4] sm:$0x1]
        %v435 = vlaneseq
        %v436 = vshrl.u32 %v435, 7
        %v437 = vsub.s32 0, %v436
        %v438 = vrot.slane %v433, %v437
        %v456 = vunpack.c.l.b16 %v417
        %v457 = vunpack.c.l.b16 %v418
        %v458 = vunpack.c.l.b16 %v419
        %v459 = vunpack.c.l.b16 %v420
        %v460 = vunpack.c.l.b16 %v421
        %v461 = vunpack.c.l.b16 %v422
        %v462 = vunpack.c.l.b16 %v423
        %v463 = vunpack.c.l.b16 %v424
        %v464 = vunpack.c.l.b16 %v425
        %v465 = vunpack.c.l.b16 %v426
        %v466 = vunpack.c.l.b16 %v427
        %v467 = vunpack.c.l.b16 %v428
        %v468 = vunpack.c.l.b16 %v429
        %v469 = vunpack.c.l.b16 %v430
        %v470 = vunpack.c.l.b16 %v431
        %v471 = vunpack.c.l.b16 %v432
        %v472 = vpack.c.b16 %v457, %v456
        %v473 = vpack.c.b16 %v459, %v458
        %v474 = vpack.c.b16 %v461, %v460
        %v475 = vpack.c.b16 %v463, %v462
        %v476 = vpack.c.b16 %v465, %v464
        %v477 = vpack.c.b16 %v467, %v466
        %v478 = vpack.c.b16 %v469, %v468
        %v479 = vpack.c.b16 %v471, %v470
        %488 = vmatprep.subr.bf16.mxu0 0
        %489 = vmatpush1.bf16.msra.mxu0 %v479
        %490 = vmatprep.subr.bf16.mxu0 0
        %491 = vmatpush1.bf16.msra.mxu0 %v478
        %492 = vmatprep.subr.bf16.mxu0 0
        %493 = vmatpush1.bf16.msra.mxu0 %v477
        %494 = vmatprep.subr.bf16.mxu0 0
        %495 = vmatpush1.bf16.msra.mxu0 %v476
        %496 = vmatprep.subr.bf16.mxu0 0
        %497 = vmatpush1.bf16.msra.mxu0 %v475
        %498 = vmatprep.subr.bf16.mxu0 0
        %499 = vmatpush1.bf16.msra.mxu0 %v474
        %500 = vmatprep.subr.bf16.mxu0 0
        %501 = vmatpush1.bf16.msra.mxu0 %v473
        %502 = vmatprep.subr.bf16.mxu0 0
        %503 = vmatpush1.bf16.msra.mxu0 %v472
        %504 = vmatprep.subr.bf16.mxu0 0
        %505 = vmatpush2.bf16.msra.mxu0 0
        %506 = vmatprep.subr.bf16.mxu0 0
        %507 = vmatpush2.bf16.msra.mxu0 0
        %508 = vmatprep.subr.bf16.mxu0 0
        %509 = vmatpush2.bf16.msra.mxu0 0
        %510 = vmatprep.subr.bf16.mxu0 0
        %511 = vmatpush2.bf16.msra.mxu0 0
        %512 = vmatprep.subr.bf16.mxu0 0
        %513 = vmatpush2.bf16.msra.mxu0 0
        %514 = vmatprep.subr.bf16.mxu0 0
        %515 = vmatpush2.bf16.msra.mxu0 0
        %516 = vmatprep.subr.bf16.mxu0 0
        %517 = vmatpush2.bf16.msra.mxu0 0
        %518 = vmatprep.subr.bf16.mxu0 0
        %519 = vmatpush2.bf16.msra.mxu0 0
        %520 = vmatprep.mubr.bf16.mxu0 0
        %521 = vmatmul.mubr.bf16.gmra.mxu0 %v416
        %v522 = vpop.f32.mrf.mxu0
        %v523 = vadd.f32 %v438, %v522
        %v524 = vpop.f32.mrf.mxu0
        %v525 = vpop.f32.mrf.mxu0
        %v526 = vadd.f32 %v438, %v525
        %v527 = vpop.f32.mrf.mxu0
        %528 = vdwg.mxu0
        %v529 = vmul.f32 %v523, 0.2
        %v530 = vmul.f32 %v526, 0.2
        %v531 = vmax.f32 %v523, %v529
        %v532 = vmax.f32 %v526, %v530
        %v533 = vld [vmem:[%s5] sm:$0x1]
        %v534 = vld [vmem:[#allocation2] sm:$0x1]
        %v536 = vlaneseq
        %v537 = vshrl.u32 %v536, 7
        %v538 = vsub.s32 0, %v537
        %v539 = vrot.slane %v533, %v538
        %v541 = vmul.f32 %v531, %v539
        %v542 = vmul.f32 %v532, %v539
        %543 = vadd.xlane.f32.xlu0 %v541
        %v544 = vpop.xlane.xlu0 %543
        %545 = vadd.xlane.f32.xlu0 %v542
        %v546 = vpop.xlane.xlu0 %545
        %v548 = vlaneseq
        %v549 = vshrl.u32 %v548, 7
        %v550 = vsub.s32 0, %v549
        %v551 = vrot.slane %v534, %v550
        %v553 = vadd.f32 %v544, %v551
        %v554 = vadd.f32 %v546, %v551
        %vm555 = vcmask 7168
        %556 = vst.msk [vmem:[%s329] sm:$0xff] %vm555, %v553
        %557 = vst.msk [vmem:[%s329 + $0x8] sm:$0xff] %vm555, %v554
        %s558 = sand.u32 %s184, 1
        %s559 = sand.u32 %s184, 1
        %s560 = smul.addr %s559, 16
        %s561 = scalar_lea.vmem [#allocation8], %s560
        // Predicated region
        $region61: #{tpu_custom_call.1} parent=47 // pred_check
          %p562 = pneg %p194
        $region62: #{tpu_custom_call.1} parent=47 // pred_check_branch
          %564 = sbr.rel (%p562) target = $region64
        $region63: #{tpu_custom_call.1} parent=47 // pred_region
          %s565 = smul.u32 2, %s24
          %s566 = ssub.s32 3, %s565
          %p567 = scmp.lt.s32.totalorder %s566, 2
          %s568 = scalar_select %p567, %s566, 2
          %s569 = smul.u32 128, %s568
          %p570 = scmp.ne.s32.totalorder 0, %s569
          %s571 = smul.addr %s565, 8
          %s572 = scalar_lea.vmem %s7, %s571
          // Predicated region
          $region65: #{tpu_custom_call.1} parent=63 // pred_check
            %p573 = pneg %p570
          $region66: #{tpu_custom_call.1} parent=63 // pred_check_branch
            %575 = sbr.rel (%p573) target = $region68
          $region67: #{tpu_custom_call.1} parent=63 // pred_region
            // Predicated region
            $region69: #{tpu_custom_call.1} parent=67 // pred_check
              _
            $region70: #{tpu_custom_call.1} parent=67 // pred_check_branch
              %577 = sbr.rel (0) target = $region72
            $region71: #{tpu_custom_call.1} parent=67 // pred_region
              // Predicated region
              $region91: #{tpu_custom_call.1} parent=71 // pred_check
                _
              $region92: #{tpu_custom_call.1} parent=71 // pred_check_branch
                %629 = sbr.rel (0) target = $region94
              $region93: #{tpu_custom_call.1} parent=71 // pred_region
                %s630 = sshrl.u32 %s568, 1
                // While loop
                $region95: #{tpu_custom_call.1} parent=93 // loop_pre_header
                  _
                $region96: #{tpu_custom_call.1} parent=93 // loop_header
                  %s632 = sphi 0, %s634
                  %p633 = scmp.ge.s32.totalorder %s632, %s630
                  %s637 = sphi 0, %s646
                  %s638 = sphi %s561, %s649
                  %s639 = sphi %s572, %s650
                $region97: #{tpu_custom_call.1} parent=93 // loop_header_branch
                  %636 = sbr.rel (%p633) target = $region101
                $region98: #{tpu_custom_call.1} parent=93 // loop_body
                  %v640 = vld [vmem:[%s638] sm:$0xff]
                  %641 = vst [vmem:[%s639] sm:$0xff] %v640
                  %v642 = vld [vmem:[%s638 + $0x8] sm:$0xff]
                  %643 = vst [vmem:[%s639 + $0x8] sm:$0xff] %v642
                  %s644 = sadd.s32 1, %s637
                  %p645 = scmp.ge.s32.totalorder %s644, %s630
                  %s646 = scalar_select %p645, 0, %s644
                  %s647 = smul.u32 %s646, 16
                  %s648 = smul.u32 %s646, 16
                  %s649 = scalar_lea.vmem %s561, %s647 [#allocation8]
                  %s650 = scalar_lea.vmem %s572, %s648
                $region99: #{tpu_custom_call.1} parent=93 // loop_footer
                  %s634 = sadd.s32 %s632, 1
                $region100: #{tpu_custom_call.1} parent=93 // loop_footer_branch
                  %631 = sbr.rel target = $region96
                $region101: #{tpu_custom_call.1} parent=93 // loop_exit
                  _
                %s651 = sshrl.u32 %s568, 1
                %s652 = sand.u32 %s568, 1
                %s653 = smul.u32 %s651, 2
                %s654 = smul.u32 8, %s653
                %s655 = scalar_lea.vmem %s561, %s654 [#allocation8]
                %s656 = smul.u32 8, %s653
                %s657 = scalar_lea.vmem %s572, %s656
                // While loop
                $region102: #{tpu_custom_call.1} parent=93 // loop_pre_header
                  _
                $region103: #{tpu_custom_call.1} parent=93 // loop_header
                  %s659 = sphi 0, %s661
                  %p660 = scmp.ge.s32.totalorder %s659, %s652
                  %s664 = sphi 0, %s671
                  %s665 = sphi %s655, %s674
                  %s666 = sphi %s657, %s675
                $region104: #{tpu_custom_call.1} parent=93 // loop_header_branch
                  %663 = sbr.rel (%p660) target = $region108
                $region105: #{tpu_custom_call.1} parent=93 // loop_body
                  %v667 = vld [vmem:[%s665] sm:$0xff]
                  %668 = vst [vmem:[%s666] sm:$0xff] %v667
                  %s669 = sadd.s32 1, %s664
                  %p670 = scmp.ge.s32.totalorder %s669, %s652
                  %s671 = scalar_select %p670, 0, %s669
                  %s672 = smul.u32 %s671, 8
                  %s673 = smul.u32 %s671, 8
                  %s674 = scalar_lea.vmem %s655, %s672 [#allocation8]
                  %s675 = scalar_lea.vmem %s657, %s673
                $region106: #{tpu_custom_call.1} parent=93 // loop_footer
                  %s661 = sadd.s32 %s659, 1
                $region107: #{tpu_custom_call.1} parent=93 // loop_footer_branch
                  %658 = sbr.rel target = $region103
                $region108: #{tpu_custom_call.1} parent=93 // loop_exit
                  _
              $region94: #{tpu_custom_call.1} parent=71 // pred_fallthru
                _
              // Predicated region
              $region109: #{tpu_custom_call.1} parent=71 // pred_check
                _
              $region110: #{tpu_custom_call.1} parent=71 // pred_check_branch
                %677 = sbr.rel target = $region112
              $region111: #{tpu_custom_call.1} parent=71 // pred_region
                _
              $region112: #{tpu_custom_call.1} parent=71 // pred_fallthru
                _
            $region72: #{tpu_custom_call.1} parent=67 // pred_fallthru
              _
            // Predicated region
            $region73: #{tpu_custom_call.1} parent=67 // pred_check
              _
            $region74: #{tpu_custom_call.1} parent=67 // pred_check_branch
              %579 = sbr.rel target = $region76
            $region75: #{tpu_custom_call.1} parent=67 // pred_region
              %s581 = ssub.s32 256, 1
              %s582 = sshrl.u32 %s568, 1
              // While loop
              $region77: #{tpu_custom_call.1} parent=75 // loop_pre_header
                _
              $region78: #{tpu_custom_call.1} parent=75 // loop_header
                %s584 = sphi 0, %s586
                %p585 = scmp.ge.s32.totalorder %s584, %s582
                %s589 = sphi 0, %s598
                %s590 = sphi %s561, %s601
                %s591 = sphi %s572, %s602
              $region79: #{tpu_custom_call.1} parent=75 // loop_header_branch
                %588 = sbr.rel (%p585) target = $region83
              $region80: #{tpu_custom_call.1} parent=75 // loop_body
                %v592 = vld [vmem:[%s590] sm:%s581]
                %593 = vst [vmem:[%s591] sm:%s581] %v592
                %v594 = vld [vmem:[%s590 + $0x8] sm:%s581]
                %595 = vst [vmem:[%s591 + $0x8] sm:%s581] %v594
                %s596 = sadd.s32 1, %s589
                %p597 = scmp.ge.s32.totalorder %s596, %s582
                %s598 = scalar_select %p597, 0, %s596
                %s599 = smul.u32 %s598, 16
                %s600 = smul.u32 %s598, 16
                %s601 = scalar_lea.vmem %s561, %s599 [#allocation8]
                %s602 = scalar_lea.vmem %s572, %s600
              $region81: #{tpu_custom_call.1} parent=75 // loop_footer
                %s586 = sadd.s32 %s584, 1
              $region82: #{tpu_custom_call.1} parent=75 // loop_footer_branch
                %583 = sbr.rel target = $region78
              $region83: #{tpu_custom_call.1} parent=75 // loop_exit
                _
              %s603 = sshrl.u32 %s568, 1
              %s604 = sand.u32 %s568, 1
              %s605 = smul.u32 %s603, 2
              %s606 = smul.u32 8, %s605
              %s607 = scalar_lea.vmem %s561, %s606 [#allocation8]
              %s608 = smul.u32 8, %s605
              %s609 = scalar_lea.vmem %s572, %s608
              // While loop
              $region84: #{tpu_custom_call.1} parent=75 // loop_pre_header
                _
              $region85: #{tpu_custom_call.1} parent=75 // loop_header
                %s611 = sphi 0, %s613
                %p612 = scmp.ge.s32.totalorder %s611, %s604
                %s616 = sphi 0, %s623
                %s617 = sphi %s607, %s626
                %s618 = sphi %s609, %s627
              $region86: #{tpu_custom_call.1} parent=75 // loop_header_branch
                %615 = sbr.rel (%p612) target = $region90
              $region87: #{tpu_custom_call.1} parent=75 // loop_body
                %v619 = vld [vmem:[%s617] sm:%s581]
                %620 = vst [vmem:[%s618] sm:%s581] %v619
                %s621 = sadd.s32 1, %s616
                %p622 = scmp.ge.s32.totalorder %s621, %s604
                %s623 = scalar_select %p622, 0, %s621
                %s624 = smul.u32 %s623, 8
                %s625 = smul.u32 %s623, 8
                %s626 = scalar_lea.vmem %s607, %s624 [#allocation8]
                %s627 = scalar_lea.vmem %s609, %s625
              $region88: #{tpu_custom_call.1} parent=75 // loop_footer
                %s613 = sadd.s32 %s611, 1
              $region89: #{tpu_custom_call.1} parent=75 // loop_footer_branch
                %610 = sbr.rel target = $region85
              $region90: #{tpu_custom_call.1} parent=75 // loop_exit
                _
            $region76: #{tpu_custom_call.1} parent=67 // pred_fallthru
              _
          $region68: #{tpu_custom_call.1} parent=63 // pred_fallthru
            _
          %678 = vnop
        $region64: #{tpu_custom_call.1} parent=47 // pred_fallthru
          _
      $region48: #{tpu_custom_call.1} parent=5 // pred_fallthru
        _
      %p679 = scmp.le.s32.totalorder 2, %s19
      // Predicated region
      $region113: #{tpu_custom_call.1} parent=5 // pred_check
        %p680 = pneg %p679
      $region114: #{tpu_custom_call.1} parent=5 // pred_check_branch
        %682 = sbr.rel (%p680) target = $region116
      $region115: #{tpu_custom_call.1} parent=5 // pred_region
        %s683 = ssub.s32 %s19, 2
        // Predicated region
        $region117: #{tpu_custom_call.1} parent=115 // pred_check
          %p684 = pneg %p200
        $region118: #{tpu_custom_call.1} parent=115 // pred_check_branch
          %686 = sbr.rel (%p684) target = $region120
        $region119: #{tpu_custom_call.1} parent=115 // pred_region
          %s687 = sand.u32 %s185, 1
          %s688 = sand.u32 %s185, 1
          %s689 = smul.addr %s688, 16
          %s690 = scalar_lea.vmem [#allocation8], %s689
        $region120: #{tpu_custom_call.1} parent=115 // pred_fallthru
          _
      $region116: #{tpu_custom_call.1} parent=5 // pred_fallthru
        _
    $region6: #{tpu_custom_call.1} parent=1 // loop_footer
      %s23 = sadd.s32 1, %s19
    $region7: #{tpu_custom_call.1} parent=1 // loop_footer_branch
      %18 = sbr.rel target = $region3
    $region8: #{tpu_custom_call.1} parent=1 // loop_exit
      _
    %691 = vsyncpa [#allocation4], 1
    %s692 = scalar_lea.sflag [#allocation4], 1
    %693 = vsyncpa %s692, 1
    %694 = vsyncpa [#allocation6], 1

// kernel: tpu_custom_call.1
$region0: #{tpu_custom_call.1}
  #allocation0 [shape = 'u32[]', space=smem, size = 0x4, offset = 0x4, fixed_abs, tag = 'smem constant byte address 0x4 - core index']
  #allocation1 [shape = 'u32[144,128]{1,0:T(1,128)}', space=vmem, size = 0x12000, scoped, tag = 'internal scratch']
  #allocation2 [shape = 'f32[1,1]{1,0:T(1,128)S(1)}', space=vmem, size = 0x200, scoped, tag = 'scoped memory for tpu_custom_call.1']
  %s0 = inlined_call_operand.hbm [shape: f32[20,32], index: 0, kind: input, shape index: {}]
  %s1 = inlined_call_operand.hbm [shape: bf16[32,128], index: 1, kind: input, shape index: {}]
  %s2 = inlined_call_operand.vmem [shape: f32[1,128], index: 2, kind: input, shape index: {}]
  %s3 = inlined_call_operand.hbm [shape: bf16[128,128], index: 3, kind: input, shape index: {}]
  %s4 = inlined_call_operand.vmem [shape: f32[1,128], index: 4, kind: input, shape index: {}]
  %s5 = inlined_call_operand.vmem [shape: f32[1,128], index: 5, kind: input, shape index: {}]
  %s6 = inlined_call_operand.<no memory space> [shape: f32[1,1], index: 6, kind: input, shape index: {}]
  %s7 = inlined_call_operand.vmem [shape: f32[20,1], index: 7, kind: output, shape index: {}]
  %s8 = sld [smem:[#allocation0]]
  $region121: #{tpu_custom_call.1} parent=0
    _
  %s10 = ssub.s32 1, %s8
  %s11 = scalar_select 0, %s10, %s8
  %v12 = vstv %s6
  %13 = vst [vmem:[#allocation2] sm:$0x1] %v12
  $region1: #{tpu_custom_call.1} parent=0
    #allocation3 [shape = 'u8[16384]{0}', space=vmem, size = 0x4000, scoped, tag = 'input window, operand 0']
    #allocation4 [shape = 's32[2]{0}', space=sflag, size = 0x8, scoped, tag = 'scoped memory for tpu_custom_call.1']
    #allocation5 [shape = 'u8[8192]{0}', space=vmem, size = 0x2000, scoped, tag = 'input window, operand 1, single buffered']
    #allocation6 [shape = 's32[1]{0}', space=sflag, size = 0x4, scoped, tag = 'scoped memory for tpu_custom_call.1']
    #allocation7 [shape = 'u8[32768]{0}', space=vmem, size = 0x8000, scoped, tag = 'input window, operand 3, single buffered']
    #allocation8 [shape = 'u8[16384]{0}', space=vmem, size = 0x4000, scoped, tag = 'output window, operand 0']
    %14 = vsyncpa [#allocation4], 0
    %s15 = scalar_lea.sflag [#allocation4], 1
    %16 = vsyncpa %s15, 0
    %17 = vsyncpa [#allocation6], 0
    loop: start=0, step=1, limit=4
    $region2: #{tpu_custom_call.1} parent=1 // loop_pre_header
      _
    $region3: #{tpu_custom_call.1} parent=1 // loop_header
      %s19 = sphi 0, %s23
      %p20 = scmp.ge.s32.totalorder %s19, 4
      %s29 = sphi 0, %s31
      %s32 = sphi 0, %s29
      %s33 = sphi 0, %s32
      %s49 = sphi 0, %s33
      %s53 = sphi 0, %s53
      %s55 = sphi 0, %s53
      %s56 = sphi 0, %s55
      %s70 = sphi 0, %s56
      %s74 = sphi 0, %s74
      %s76 = sphi 0, %s74
      %s77 = sphi 0, %s76
      %s91 = sphi 0, %s77
      %s95 = sphi 0, %s95
      %s97 = sphi 0, %s95
      %s98 = sphi 0, %s97
      %s112 = sphi 0, %s98
      %s116 = sphi 0, %s116
      %s118 = sphi 0, %s116
      %s119 = sphi 0, %s118
      %s133 = sphi 0, %s119
      %s137 = sphi 0, %s137
      %s139 = sphi 0, %s137
      %s140 = sphi 0, %s139
      %s154 = sphi 0, %s140
      %s158 = sphi 0, %s158
      %s160 = sphi 0, %s158
      %s161 = sphi 0, %s160
      %s175 = sphi 0, %s161
      %s181 = sphi 0, %s183
      %s184 = sphi 0, %s181
      %s185 = sphi 0, %s184
      %s201 = sphi 0, %s185
    $region4: #{tpu_custom_call.1} parent=1 // loop_header_branch
      %22 = sbr.rel (%p20) target = $region8
    $region5: #{tpu_custom_call.1} parent=1 // loop_body
      %s24 = ssub.s32 %s19, 1
      %s25 = ssub.s32 %s19, 2
      %s26 = sadd.s32 %s19, 1
      %s27 = ssub.s32 %s19, %s26
      %p28 = scmp.eq.s32.totalorder %s27, 0
      %s30 = sadd.s32 %s29, 1
      %s31 = scalar_select %p28, %s29, %s30
      %p34 = pneg %p28
      %p35 = scmp.eq.s32.totalorder %s19, 1
      %p36 = por %p34, %p35
      %p37 = scmp.ne.s32.totalorder %s29, %s32
      %p38 = scmp.eq.s32.totalorder %s19, 0
      %p39 = por %p37, %p38
      %p40 = scmp.ne.s32.totalorder %s29, %s32
      %p41 = scmp.eq.s32.totalorder %s24, 1
      %p42 = por %p40, %p41
      %p43 = scmp.ne.s32.totalorder %s32, %s33
      %p44 = scmp.eq.s32.totalorder %s24, 0
      %p45 = por %p43, %p44
      %p46 = scmp.ne.s32.totalorder %s32, %s33
      %p47 = scmp.eq.s32.totalorder %s25, 1
      %p48 = por %p46, %p47
      %p50 = scmp.ne.s32.totalorder %s33, %s49
      %p51 = scmp.eq.s32.totalorder %s25, 0
      %p52 = por %p50, %p51
      %s54 = sadd.s32 %s53, 1
      %p57 = scmp.eq.s32.totalorder %s19, 1
      %p58 = scmp.ne.s32.totalorder %s53, %s55
      %p59 = scmp.eq.s32.totalorder %s19, 0
      %p60 = por %p58, %p59
      %p61 = scmp.ne.s32.totalorder %s53, %s55
      %p62 = scmp.eq.s32.totalorder %s24, 1
      %p63 = por %p61, %p62
      %p64 = scmp.ne.s32.totalorder %s55, %s56
      %p65 = scmp.eq.s32.totalorder %s24, 0
      %p66 = por %p64, %p65
      %p67 = scmp.ne.s32.totalorder %s55, %s56
      %p68 = scmp.eq.s32.totalorder %s25, 1
      %p69 = por %p67, %p68
      %p71 = scmp.ne.s32.totalorder %s56, %s70
      %p72 = scmp.eq.s32.totalorder %s25, 0
      %p73 = por %p71, %p72
      %s75 = sadd.s32 %s74, 1
      %p78 = scmp.eq.s32.totalorder %s19, 1
      %p79 = scmp.ne.s32.totalorder %s74, %s76
      %p80 = scmp.eq.s32.totalorder %s19, 0
      %p81 = por %p79, %p80
      %p82 = scmp.ne.s32.totalorder %s74, %s76
      %p83 = scmp.eq.s32.totalorder %s24, 1
      %p84 = por %p82, %p83
      %p85 = scmp.ne.s32.totalorder %s76, %s77
      %p86 = scmp.eq.s32.totalorder %s24, 0
      %p87 = por %p85, %p86
      %p88 = scmp.ne.s32.totalorder %s76, %s77
      %p89 = scmp.eq.s32.totalorder %s25, 1
      %p90 = por %p88, %p89
      %p92 = scmp.ne.s32.totalorder %s77, %s91
      %p93 = scmp.eq.s32.totalorder %s25, 0
      %p94 = por %p92, %p93
      %s96 = sadd.s32 %s95, 1
      %p99 = scmp.eq.s32.totalorder %s19, 1
      %p100 = scmp.ne.s32.totalorder %s95, %s97
      %p101 = scmp.eq.s32.totalorder %s19, 0
      %p102 = por %p100, %p101
      %p103 = scmp.ne.s32.totalorder %s95, %s97
      %p104 = scmp.eq.s32.totalorder %s24, 1
      %p105 = por %p103, %p104
      %p106 = scmp.ne.s32.totalorder %s97, %s98
      %p107 = scmp.eq.s32.totalorder %s24, 0
      %p108 = por %p106, %p107
      %p109 = scmp.ne.s32.totalorder %s97, %s98
      %p110 = scmp.eq.s32.totalorder %s25, 1
      %p111 = por %p109, %p110
      %p113 = scmp.ne.s32.totalorder %s98, %s112
      %p114 = scmp.eq.s32.totalorder %s25, 0
      %p115 = por %p113, %p114
      %s117 = sadd.s32 %s116, 1
      %p120 = scmp.eq.s32.totalorder %s19, 1
      %p121 = scmp.ne.s32.totalorder %s116, %s118
      %p122 = scmp.eq.s32.totalorder %s19, 0
      %p123 = por %p121, %p122
      %p124 = scmp.ne.s32.totalorder %s116, %s118
      %p125 = scmp.eq.s32.totalorder %s24, 1
      %p126 = por %p124, %p125
      %p127 = scmp.ne.s32.totalorder %s118, %s119
      %p128 = scmp.eq.s32.totalorder %s24, 0
      %p129 = por %p127, %p128
      %p130 = scmp.ne.s32.totalorder %s118, %s119
      %p131 = scmp.eq.s32.totalorder %s25, 1
      %p132 = por %p130, %p131
      %p134 = scmp.ne.s32.totalorder %s119, %s133
      %p135 = scmp.eq.s32.totalorder %s25, 0
      %p136 = por %p134, %p135
      %s138 = sadd.s32 %s137, 1
      %p141 = scmp.eq.s32.totalorder %s19, 1
      %p142 = scmp.ne.s32.totalorder %s137, %s139
      %p143 = scmp.eq.s32.totalorder %s19, 0
      %p144 = por %p142, %p143
      %p145 = scmp.ne.s32.totalorder %s137, %s139
      %p146 = scmp.eq.s32.totalorder %s24, 1
      %p147 = por %p145, %p146
      %p148 = scmp.ne.s32.totalorder %s139, %s140
      %p149 = scmp.eq.s32.totalorder %s24, 0
      %p150 = por %p148, %p149
      %p151 = scmp.ne.s32.totalorder %s139, %s140
      %p152 = scmp.eq.s32.totalorder %s25, 1
      %p153 = por %p151, %p152
      %p155 = scmp.ne.s32.totalorder %s140, %s154
      %p156 = scmp.eq.s32.totalorder %s25, 0
      %p157 = por %p155, %p156
      %s159 = sadd.s32 %s158, 1
      %p162 = scmp.eq.s32.totalorder %s19, 1
      %p163 = scmp.ne.s32.totalorder %s158, %s160
      %p164 = scmp.eq.s32.totalorder %s19, 0
      %p165 = por %p163, %p164
      %p166 = scmp.ne.s32.totalorder %s158, %s160
      %p167 = scmp.eq.s32.totalorder %s24, 1
      %p168 = por %p166, %p167
      %p169 = scmp.ne.s32.totalorder %s160, %s161
      %p170 = scmp.eq.s32.totalorder %s24, 0
      %p171 = por %p169, %p170
      %p172 = scmp.ne.s32.totalorder %s160, %s161
      %p173 = scmp.eq.s32.totalorder %s25, 1
      %p174 = por %p172, %p173
      %p176 = scmp.ne.s32.totalorder %s161, %s175
      %p177 = scmp.eq.s32.totalorder %s25, 0
      %p178 = por %p176, %p177
      %s179 = ssub.s32 %s19, %s26
      %p180 = scmp.eq.s32.totalorder %s179, 0
      %s182 = sadd.s32 %s181, 1
      %s183 = scalar_select %p180, %s181, %s182
      %p186 = pneg %p180
      %p187 = scmp.eq.s32.totalorder %s19, 1
      %p188 = por %p186, %p187
      %p189 = scmp.ne.s32.totalorder %s181, %s184
      %p190 = scmp.eq.s32.totalorder %s19, 0
      %p191 = por %p189, %p190
      %p192 = scmp.ne.s32.totalorder %s181, %s184
      %p193 = scmp.eq.s32.totalorder %s24, 1
      %p194 = por %p192, %p193
      %p195 = scmp.ne.s32.totalorder %s184, %s185
      %p196 = scmp.eq.s32.totalorder %s24, 0
      %p197 = por %p195, %p196
      %p198 = scmp.ne.s32.totalorder %s184, %s185
      %p199 = scmp.eq.s32.totalorder %s25, 1
      %p200 = por %p198, %p199
      %p202 = scmp.ne.s32.totalorder %s185, %s201
      %p203 = scmp.eq.s32.totalorder %s25, 0
      %p204 = por %p202, %p203
      %p205 = scmp.le.s32.totalorder 1, %s19
      %p206 = scmp.lt.s32.totalorder %s19, 3
      %p207 = pnand %p205, %p206
      %p208 = pneg %p207
      // Predicated region
      $region9: #{tpu_custom_call.1} parent=5 // pred_check
        _
      $region10: #{tpu_custom_call.1} parent=5 // pred_check_branch
        %210 = sbr.rel (%p207) target = $region12
      $region11: #{tpu_custom_call.1} parent=5 // pred_region
        %s211 = ssub.s32 %s19, 1
        // Predicated region
        $region13: #{tpu_custom_call.1} parent=11 // pred_check
          %p212 = pneg %p66
        $region14: #{tpu_custom_call.1} parent=11 // pred_check_branch
          %214 = sbr.rel (%p212) target = $region16
        $region15: #{tpu_custom_call.1} parent=11 // pred_region
          %s216 = ssub.s32 256, 256
          %217 = vsyncadd [#allocation6], %s216
          %s218 = sshll.u32 [#allocation5], 4
          %s219 = int_to_ptr.vmem [resolvable:$true] %s218
          %224 = dma.hbm_to_vmem [thread:$0]  %s1, 256, %s219, [#allocation6], 64, 64, 4
        $region16: #{tpu_custom_call.1} parent=11 // pred_fallthru
          _
        // Predicated region
        $region17: #{tpu_custom_call.1} parent=11 // pred_check
          %p225 = pneg %p87
        $region18: #{tpu_custom_call.1} parent=11 // pred_check_branch
          %227 = sbr.rel (%p225) target = $region20
        $region19: #{tpu_custom_call.1} parent=11 // pred_region
          _
        $region20: #{tpu_custom_call.1} parent=11 // pred_fallthru
          _
        // Predicated region
        $region21: #{tpu_custom_call.1} parent=11 // pred_check
          %p228 = pneg %p108
        $region22: #{tpu_custom_call.1} parent=11 // pred_check_branch
          %230 = sbr.rel (%p228) target = $region24
        $region23: #{tpu_custom_call.1} parent=11 // pred_region
          %s232 = ssub.s32 1024, 1024
          %233 = vsyncadd [#allocation6], %s232
          %s234 = sshll.u32 [#allocation7], 4
          %s235 = int_to_ptr.vmem [resolvable:$true] %s234
          %240 = dma.hbm_to_vmem [thread:$0]  %s3, 1024, %s235, [#allocation6], 64, 64, 4
        $region24: #{tpu_custom_call.1} parent=11 // pred_fallthru
          _
        // Predicated region
        $region25: #{tpu_custom_call.1} parent=11 // pred_check
          %p241 = pneg %p129
        $region26: #{tpu_custom_call.1} parent=11 // pred_check_branch
          %243 = sbr.rel (%p241) target = $region28
        $region27: #{tpu_custom_call.1} parent=11 // pred_region
          _
        $region28: #{tpu_custom_call.1} parent=11 // pred_fallthru
          _
        // Predicated region
        $region29: #{tpu_custom_call.1} parent=11 // pred_check
          %p244 = pneg %p150
        $region30: #{tpu_custom_call.1} parent=11 // pred_check_branch
          %246 = sbr.rel (%p244) target = $region32
        $region31: #{tpu_custom_call.1} parent=11 // pred_region
          _
        $region32: #{tpu_custom_call.1} parent=11 // pred_fallthru
          _
        // Predicated region
        $region33: #{tpu_custom_call.1} parent=11 // pred_check
          %p247 = pneg %p171
        $region34: #{tpu_custom_call.1} parent=11 // pred_check_branch
          %249 = sbr.rel (%p247) target = $region36
        $region35: #{tpu_custom_call.1} parent=11 // pred_region
          _
        $region36: #{tpu_custom_call.1} parent=11 // pred_fallthru
          _
      $region12: #{tpu_custom_call.1} parent=5 // pred_fallthru
        _
      %p250 = scmp.lt.s32.totalorder %s19, 2
      // Predicated region
      $region37: #{tpu_custom_call.1} parent=5 // pred_check
        %p251 = pneg %p250
      $region38: #{tpu_custom_call.1} parent=5 // pred_check_branch
        %253 = sbr.rel (%p251) target = $region40
      $region39: #{tpu_custom_call.1} parent=5 // pred_region
        // Predicated region
        $region41: #{tpu_custom_call.1} parent=39 // pred_check
          %p254 = pneg %p39
        $region42: #{tpu_custom_call.1} parent=39 // pred_check_branch
          %256 = sbr.rel (%p254) target = $region44
        $region43: #{tpu_custom_call.1} parent=39 // pred_region
          %s257 = sand.u32 %s29, 1
          %s258 = scalar_lea.sflag [#allocation4], %s257
          %s259 = sand.u32 %s29, 1
          %s260 = smul.addr %s259, 16
          %s261 = scalar_lea.vmem [#allocation3], %s260
          %s262 = smul.u32 2, %s19
          %s263 = ssub.s32 3, %s262
          %p264 = scmp.lt.s32.totalorder %s263, 2
          %s265 = scalar_select %p264, %s263, 2
          %s266 = smul.u32 128, %s265
          %s268 = ssub.s32 256, %s266
          %269 = vsyncadd %s258, %s268
          %p270 = scmp.ne.s32.totalorder 0, %s266
          %s271 = smul.addr %s262, 128
          %s272 = scalar_lea.hbm %s0, %s271
          %s273 = smul.u32 8, %s265
          %s274 = sshll.u32 %s261, 4
          %s275 = int_to_ptr.vmem [resolvable:$true] %s274
          %s276 = sshll.u32 %s273, 4
          %280 = dma.hbm_to_vmem [thread:$0]  (%p270), %s272, %s276, %s275, %s258, 128, 128, 8
        $region44: #{tpu_custom_call.1} parent=39 // pred_fallthru
          _
      $region40: #{tpu_custom_call.1} parent=5 // pred_fallthru
        _
      %p281 = scmp.le.s32.totalorder 1, %s19
      %p282 = scmp.lt.s32.totalorder %s19, 3
      %p283 = pnand %p281, %p282
      %p284 = pneg %p283
      // Predicated region
      $region45: #{tpu_custom_call.1} parent=5 // pred_check
        _
      $region46: #{tpu_custom_call.1} parent=5 // pred_check_branch
        %286 = sbr.rel (%p283) target = $region48
      $region47: #{tpu_custom_call.1} parent=5 // pred_region
        %s287 = ssub.s32 %s19, 1
        %s288 = sand.u32 %s32, 1
        %s289 = scalar_lea.sflag [#allocation4], %s288
        %s290 = sand.u32 %s32, 1
        %s291 = smul.addr %s290, 16
        %s292 = scalar_lea.vmem [#allocation3], %s291
        // Predicated region
        $region49: #{tpu_custom_call.1} parent=47 // pred_check
          %p293 = pneg %p45
        $region50: #{tpu_custom_call.1} parent=47 // pred_check_branch
          %295 = sbr.rel (%p293) target = $region52
        $region51: #{tpu_custom_call.1} parent=47 // pred_region
          %296 = dma.done %s289, 256
        $region52: #{tpu_custom_call.1} parent=47 // pred_fallthru
          _
        // Predicated region
        $region53: #{tpu_custom_call.1} parent=47 // pred_check
          %p297 = pneg %p66
        $region54: #{tpu_custom_call.1} parent=47 // pred_check_branch
          %299 = sbr.rel (%p297) target = $region56
        $region55: #{tpu_custom_call.1} parent=47 // pred_region
          %300 = dma.done [#allocation6], 256
        $region56: #{tpu_custom_call.1} parent=47 // pred_fallthru
          _
        // Predicated region
        $region57: #{tpu_custom_call.1} parent=47 // pred_check
          %p301 = pneg %p108
        $region58: #{tpu_custom_call.1} parent=47 // pred_check_branch
          %303 = sbr.rel (%p301) target = $region60
        $region59: #{tpu_custom_call.1} parent=47 // pred_region
          %304 = dma.done [#allocation6], 1024
        $region60: #{tpu_custom_call.1} parent=47 // pred_fallthru
          _
        %s305 = sand.u32 %s32, 1
        %s306 = scalar_lea.sflag [#allocation4], %s305
        %s307 = sand.u32 %s32, 1
        %s308 = smul.addr %s307, 16
        %s309 = scalar_lea.vmem [#allocation3], %s308
        %p310 = pneg %p45
        %p311 = pneg %p42
        %p312 = pneg %p66
        %p313 = pneg %p63
        %p314 = pneg %p87
        %p315 = pneg %p84
        %p316 = pneg %p108
        %p317 = pneg %p105
        %p318 = pneg %p129
        %p319 = pneg %p126
        %p320 = pneg %p150
        %p321 = pneg %p147
        %p322 = pneg %p171
        %p323 = pneg %p168
        %p324 = pneg %p197
        %p325 = pneg %p194
        %s326 = sand.u32 %s184, 1
        %s327 = sand.u32 %s184, 1
        %s328 = smul.addr %s327, 16
        %s329 = scalar_lea.vmem [#allocation8], %s328
        %s330 = smul.u32 2, %s24
        %s331 = ssub.s32 3, %s330
        %p332 = scmp.lt.s32.totalorder %s331, 2
        %s333 = scalar_select %p332, %s331, 2
        %s334 = smul.u32 128, %s333
        %s335 = smul.u32 2, %s24
        %s336 = ssub.s32 3, %s335
        %p337 = scmp.lt.s32.totalorder %s336, 2
        %s338 = scalar_select %p337, %s336, 2
        %s339 = smul.u32 128, %s338
        %v341 = vld [vmem:[%s292] sm:$0xff]
        %v342 = vld [vmem:[%s292 + $0x8] sm:$0xff]
        %v343 = vpack.c.bf16 %v342, %v341
        %v344 = vld [vmem:[#allocation5] sm:$0xf]
        %v345 = vld [vmem:[#allocation5 + $0x4] sm:$0xf]
        %v346 = vld [vmem:[#allocation5 + $0x8] sm:$0xf]
        %v347 = vld [vmem:[#allocation5 + $0xc] sm:$0xf]
        %v348 = vld [vmem:[%s2] sm:$0x1]
        %v350 = vlaneseq
        %v351 = vshrl.u32 %v350, 7
        %v352 = vsub.s32 0, %v351
        %v353 = vrot.slane %v348, %v352
        %v359 = vunpack.c.l.b16 %v344
        %v360 = vunpack.c.l.b16 %v345
        %v361 = vunpack.c.l.b16 %v346
        %v362 = vunpack.c.l.b16 %v347
        %v363 = vpack.c.b16 %v360, %v359
        %v364 = vpack.c.b16 %v362, %v361
        %vm367 = vcmask 261120
        %v369 = vsel %vm367, %v343, 0
        %371 = vmatprep.subr.bf16.mxu0 0
        %372 = vmatpush1.bf16.msra.mxu0 0
        %373 = vmatprep.subr.bf16.mxu0 0
        %374 = vmatpush1.bf16.msra.mxu0 0
        %375 = vmatprep.subr.bf16.mxu0 0
        %376 = vmatpush1.bf16.msra.mxu0 0
        %377 = vmatprep.subr.bf16.mxu0 0
        %378 = vmatpush1.bf16.msra.mxu0 0
        %379 = vmatprep.subr.bf16.mxu0 0
        %380 = vmatpush1.bf16.msra.mxu0 0
        %381 = vmatprep.subr.bf16.mxu0 0
        %382 = vmatpush1.bf16.msra.mxu0 0
        %383 = vmatprep.subr.bf16.mxu0 0
        %384 = vmatpush1.bf16.msra.mxu0 %v364
        %385 = vmatprep.subr.bf16.mxu0 0
        %386 = vmatpush1.bf16.msra.mxu0 %v363
        %387 = vmatprep.subr.bf16.mxu0 0
        %388 = vmatpush2.bf16.msra.mxu0 0
        %389 = vmatprep.subr.bf16.mxu0 0
        %390 = vmatpush2.bf16.msra.mxu0 0
        %391 = vmatprep.subr.bf16.mxu0 0
        %392 = vmatpush2.bf16.msra.mxu0 0
        %393 = vmatprep.subr.bf16.mxu0 0
        %394 = vmatpush2.bf16.msra.mxu0 0
        %395 = vmatprep.subr.bf16.mxu0 0
        %396 = vmatpush2.bf16.msra.mxu0 0
        %397 = vmatprep.subr.bf16.mxu0 0
        %398 = vmatpush2.bf16.msra.mxu0 0
        %399 = vmatprep.subr.bf16.mxu0 0
        %400 = vmatpush2.bf16.msra.mxu0 0
        %401 = vmatprep.subr.bf16.mxu0 0
        %402 = vmatpush2.bf16.msra.mxu0 0
        %403 = vmatprep.mubr.bf16.mxu0 0
        %404 = vmatmul.mubr.bf16.gmra.mxu0 %v369
        %v405 = vpop.f32.mrf.mxu0
        %v406 = vadd.f32 %v353, %v405
        %v407 = vpop.f32.mrf.mxu0
        %v408 = vpop.f32.mrf.mxu0
        %v409 = vadd.f32 %v353, %v408
        %v410 = vpop.f32.mrf.mxu0
        %411 = vdwg.mxu0
        %v412 = vmul.f32 %v406, 0.2
        %v413 = vmul.f32 %v409, 0.2
        %v414 = vmax.f32 %v406, %v412
        %v415 = vmax.f32 %v409, %v413
        %v416 = vpack.c.bf16 %v415, %v414
        %v417 = vld [vmem:[#allocation7] sm:$0xf]
        %v418 = vld [vmem:[#allocation7 + $0x4] sm:$0xf]
        %v419 = vld [vmem:[#allocation7 + $0x8] sm:$0xf]
        %v420 = vld [vmem:[#allocation7 + $0xc] sm:$0xf]
        %v421 = vld [vmem:[#allocation7 + $0x10] sm:$0xf]
        %v422 = vld [vmem:[#allocation7 + $0x14] sm:$0xf]
        %v423 = vld [vmem:[#allocation7 + $0x18] sm:$0xf]
        %v424 = vld [vmem:[#allocation7 + $0x1c] sm:$0xf]
        %v425 = vld [vmem:[#allocation7 + $0x20] sm:$0xf]
        %v426 = vld [vmem:[#allocation7 + $0x24] sm:$0xf]
        %v427 = vld [vmem:[#allocation7 + $0x28] sm:$0xf]
        %v428 = vld [vmem:[#allocation7 + $0x2c] sm:$0xf]
        %v429 = vld [vmem:[#allocation7 + $0x30] sm:$0xf]
        %v430 = vld [vmem:[#allocation7 + $0x34] sm:$0xf]
        %v431 = vld [vmem:[#allocation7 + $0x38] sm:$0xf]
        %v432 = vld [vmem:[#allocation7 + $0x3c] sm:$0xf]
        %v433 = vld [vmem:[%s4] sm:$0x1]
        %v435 = vlaneseq
        %v436 = vshrl.u32 %v435, 7
        %v437 = vsub.s32 0, %v436
        %v438 = vrot.slane %v433, %v437
        %v456 = vunpack.c.l.b16 %v417
        %v457 = vunpack.c.l.b16 %v418
        %v458 = vunpack.c.l.b16 %v419
        %v459 = vunpack.c.l.b16 %v420
        %v460 = vunpack.c.l.b16 %v421
        %v461 = vunpack.c.l.b16 %v422
        %v462 = vunpack.c.l.b16 %v423
        %v463 = vunpack.c.l.b16 %v424
        %v464 = vunpack.c.l.b16 %v425
        %v465 = vunpack.c.l.b16 %v426
        %v466 = vunpack.c.l.b16 %v427
        %v467 = vunpack.c.l.b16 %v428
        %v468 = vunpack.c.l.b16 %v429
        %v469 = vunpack.c.l.b16 %v430
        %v470 = vunpack.c.l.b16 %v431
        %v471 = vunpack.c.l.b16 %v432
        %v472 = vpack.c.b16 %v457, %v456
        %v473 = vpack.c.b16 %v459, %v458
        %v474 = vpack.c.b16 %v461, %v460
        %v475 = vpack.c.b16 %v463, %v462
        %v476 = vpack.c.b16 %v465, %v464
        %v477 = vpack.c.b16 %v467, %v466
        %v478 = vpack.c.b16 %v469, %v468
        %v479 = vpack.c.b16 %v471, %v470
        %488 = vmatprep.subr.bf16.mxu0 0
        %489 = vmatpush1.bf16.msra.mxu0 %v479
        %490 = vmatprep.subr.bf16.mxu0 0
        %491 = vmatpush1.bf16.msra.mxu0 %v478
        %492 = vmatprep.subr.bf16.mxu0 0
        %493 = vmatpush1.bf16.msra.mxu0 %v477
        %494 = vmatprep.subr.bf16.mxu0 0
        %495 = vmatpush1.bf16.msra.mxu0 %v476
        %496 = vmatprep.subr.bf16.mxu0 0
        %497 = vmatpush1.bf16.msra.mxu0 %v475
        %498 = vmatprep.subr.bf16.mxu0 0
        %499 = vmatpush1.bf16.msra.mxu0 %v474
        %500 = vmatprep.subr.bf16.mxu0 0
        %501 = vmatpush1.bf16.msra.mxu0 %v473
        %502 = vmatprep.subr.bf16.mxu0 0
        %503 = vmatpush1.bf16.msra.mxu0 %v472
        %504 = vmatprep.subr.bf16.mxu0 0
        %505 = vmatpush2.bf16.msra.mxu0 0
        %506 = vmatprep.subr.bf16.mxu0 0
        %507 = vmatpush2.bf16.msra.mxu0 0
        %508 = vmatprep.subr.bf16.mxu0 0
        %509 = vmatpush2.bf16.msra.mxu0 0
        %510 = vmatprep.subr.bf16.mxu0 0
        %511 = vmatpush2.bf16.msra.mxu0 0
        %512 = vmatprep.subr.bf16.mxu0 0
        %513 = vmatpush2.bf16.msra.mxu0 0
        %514 = vmatprep.subr.bf16.mxu0 0
        %515 = vmatpush2.bf16.msra.mxu0 0
        %516 = vmatprep.subr.bf16.mxu0 0
        %517 = vmatpush2.bf16.msra.mxu0 0
        %518 = vmatprep.subr.bf16.mxu0 0
        %519 = vmatpush2.bf16.msra.mxu0 0
        %520 = vmatprep.mubr.bf16.mxu0 0
        %521 = vmatmul.mubr.bf16.gmra.mxu0 %v416
        %v522 = vpop.f32.mrf.mxu0
        %v523 = vadd.f32 %v438, %v522
        %v524 = vpop.f32.mrf.mxu0
        %v525 = vpop.f32.mrf.mxu0
        %v526 = vadd.f32 %v438, %v525
        %v527 = vpop.f32.mrf.mxu0
        %528 = vdwg.mxu0
        %v529 = vmul.f32 %v523, 0.2
        %v530 = vmul.f32 %v526, 0.2
        %v531 = vmax.f32 %v523, %v529
        %v532 = vmax.f32 %v526, %v530
        %v533 = vld [vmem:[%s5] sm:$0x1]
        %v534 = vld [vmem:[#allocation2] sm:$0x1]
        %v536 = vlaneseq
        %v537 = vshrl.u32 %v536, 7
        %v538 = vsub.s32 0, %v537
        %v539 = vrot.slane %v533, %v538
        %v541 = vmul.f32 %v531, %v539
        %v542 = vmul.f32 %v532, %v539
        %543 = vadd.xlane.f32.xlu0 %v541
        %v544 = vpop.xlane.xlu0 %543
        %545 = vadd.xlane.f32.xlu0 %v542
        %v546 = vpop.xlane.xlu0 %545
        %v548 = vlaneseq
        %v549 = vshrl.u32 %v548, 7
        %v550 = vsub.s32 0, %v549
        %v551 = vrot.slane %v534, %v550
        %v553 = vadd.f32 %v544, %v551
        %v554 = vadd.f32 %v546, %v551
        %vm555 = vcmask 7168
        %556 = vst.msk [vmem:[%s329] sm:$0xff] %vm555, %v553
        %557 = vst.msk [vmem:[%s329 + $0x8] sm:$0xff] %vm555, %v554
        %s558 = sand.u32 %s184, 1
        %s559 = sand.u32 %s184, 1
        %s560 = smul.addr %s559, 16
        %s561 = scalar_lea.vmem [#allocation8], %s560
        // Predicated region
        $region61: #{tpu_custom_call.1} parent=47 // pred_check
          %p562 = pneg %p194
        $region62: #{tpu_custom_call.1} parent=47 // pred_check_branch
          %564 = sbr.rel (%p562) target = $region64
        $region63: #{tpu_custom_call.1} parent=47 // pred_region
          %s565 = smul.u32 2, %s24
          %s566 = ssub.s32 3, %s565
          %p567 = scmp.lt.s32.totalorder %s566, 2
          %s568 = scalar_select %p567, %s566, 2
          %s569 = smul.u32 128, %s568
          %p570 = scmp.ne.s32.totalorder 0, %s569
          %s571 = smul.addr %s565, 8
          %s572 = scalar_lea.vmem %s7, %s571
          // Predicated region
          $region65: #{tpu_custom_call.1} parent=63 // pred_check
            %p573 = pneg %p570
          $region66: #{tpu_custom_call.1} parent=63 // pred_check_branch
            %575 = sbr.rel (%p573) target = $region68
          $region67: #{tpu_custom_call.1} parent=63 // pred_region
            // Predicated region
            $region69: #{tpu_custom_call.1} parent=67 // pred_check
              _
            $region70: #{tpu_custom_call.1} parent=67 // pred_check_branch
              %577 = sbr.rel (0) target = $region72
            $region71: #{tpu_custom_call.1} parent=67 // pred_region
              // Predicated region
              $region91: #{tpu_custom_call.1} parent=71 // pred_check
                _
              $region92: #{tpu_custom_call.1} parent=71 // pred_check_branch
                %629 = sbr.rel (0) target = $region94
              $region93: #{tpu_custom_call.1} parent=71 // pred_region
                %s630 = sshrl.u32 %s568, 1
                // While loop
                $region95: #{tpu_custom_call.1} parent=93 // loop_pre_header
                  _
                $region96: #{tpu_custom_call.1} parent=93 // loop_header
                  %s632 = sphi 0, %s634
                  %p633 = scmp.ge.s32.totalorder %s632, %s630
                  %s637 = sphi 0, %s646
                  %s638 = sphi %s561, %s649
                  %s639 = sphi %s572, %s650
                $region97: #{tpu_custom_call.1} parent=93 // loop_header_branch
                  %636 = sbr.rel (%p633) target = $region101
                $region98: #{tpu_custom_call.1} parent=93 // loop_body
                  %v640 = vld [vmem:[%s638] sm:$0xff]
                  %641 = vst [vmem:[%s639] sm:$0xff] %v640
                  %v642 = vld [vmem:[%s638 + $0x8] sm:$0xff]
                  %643 = vst [vmem:[%s639 + $0x8] sm:$0xff] %v642
                  %s644 = sadd.s32 1, %s637
                  %p645 = scmp.ge.s32.totalorder %s644, %s630
                  %s646 = scalar_select %p645, 0, %s644
                  %s647 = smul.u32 %s646, 16
                  %s648 = smul.u32 %s646, 16
                  %s649 = scalar_lea.vmem %s561, %s647 [#allocation8]
                  %s650 = scalar_lea.vmem %s572, %s648
                $region99: #{tpu_custom_call.1} parent=93 // loop_footer
                  %s634 = sadd.s32 %s632, 1
                $region100: #{tpu_custom_call.1} parent=93 // loop_footer_branch
                  %631 = sbr.rel target = $region96
                $region101: #{tpu_custom_call.1} parent=93 // loop_exit
                  _
                %s651 = sshrl.u32 %s568, 1
                %s652 = sand.u32 %s568, 1
                %s653 = smul.u32 %s651, 2
                %s654 = smul.u32 8, %s653
                %s655 = scalar_lea.vmem %s561, %s654 [#allocation8]
                %s656 = smul.u32 8, %s653
                %s657 = scalar_lea.vmem %s572, %s656
                // While loop
                $region102: #{tpu_custom_call.1} parent=93 // loop_pre_header
                  _
                $region103: #{tpu_custom_call.1} parent=93 // loop_header
                  %s659 = sphi 0, %s661
                  %p660 = scmp.ge.s32.totalorder %s659, %s652
                  %s664 = sphi 0, %s671
                  %s665 = sphi %s655, %s674
                  %s666 = sphi %s657, %s675
                $region104: #{tpu_custom_call.1} parent=93 // loop_header_branch
                  %663 = sbr.rel (%p660) target = $region108
                $region105: #{tpu_custom_call.1} parent=93 // loop_body
                  %v667 = vld [vmem:[%s665] sm:$0xff]
                  %668 = vst [vmem:[%s666] sm:$0xff] %v667
                  %s669 = sadd.s32 1, %s664
                  %p670 = scmp.ge.s32.totalorder %s669, %s652
                  %s671 = scalar_select %p670, 0, %s669
                  %s672 = smul.u32 %s671, 8
                  %s673 = smul.u32 %s671, 8
                  %s674 = scalar_lea.vmem %s655, %s672 [#allocation8]
                  %s675 = scalar_lea.vmem %s657, %s673
                $region106: #{tpu_custom_call.1} parent=93 // loop_footer
                  %s661 = sadd.s32 %s659, 1
                $region107: #{tpu_custom_call.1} parent=93 // loop_footer_branch
                  %658 = sbr.rel target = $region103
                $region108: #{tpu_custom_call.1} parent=93 // loop_exit
                  _
              $region94: #{tpu_custom_call.1} parent=71 // pred_fallthru
                _
              // Predicated region
              $region109: #{tpu_custom_call.1} parent=71 // pred_check
                _
              $region110: #{tpu_custom_call.1} parent=71 // pred_check_branch
                %677 = sbr.rel target = $region112
              $region111: #{tpu_custom_call.1} parent=71 // pred_region
                _
              $region112: #{tpu_custom_call.1} parent=71 // pred_fallthru
                _
            $region72: #{tpu_custom_call.1} parent=67 // pred_fallthru
              _
            // Predicated region
            $region73: #{tpu_custom_call.1} parent=67 // pred_check
              _
            $region74: #{tpu_custom_call.1} parent=67 // pred_check_branch
              %579 = sbr.rel target = $region76
            $region75: #{tpu_custom_call.1} parent=67 // pred_region
              %s581 = ssub.s32 256, 1
              %s582 = sshrl.u32 %s568, 1
              // While loop
              $region77: #{tpu_custom_call.1} parent=75 // loop_pre_header
                _
              $region78: #{tpu_custom_call.1} parent=75 // loop_header
                %s584 = sphi 0, %s586
                %p585 = scmp.ge.s32.totalorder %s584, %s582
                %s589 = sphi 0, %s598
                %s590 = sphi %s561, %s601
                %s591 = sphi %s572, %s602
              $region79: #{tpu_custom_call.1} parent=75 // loop_header_branch
                %588 = sbr.rel (%p585) target = $region83
              $region80: #{tpu_custom_call.1} parent=75 // loop_body
                %v592 = vld [vmem:[%s590] sm:%s581]
                %593 = vst [vmem:[%s591] sm:%s581] %v592
                %v594 = vld [vmem:[%s590 + $0x8] sm:%s581]
                %595 = vst [vmem:[%s591 + $0x8] sm:%s581] %v594
                %s596 = sadd.s32 1, %s589
                %p597 = scmp.ge.s32.totalorder %s596, %s582
                %s598 = scalar_select %p597, 0, %s596
                %s599 = smul.u32 %s598, 16
                %s600 = smul.u32 %s598, 16
                %s601 = scalar_lea.vmem %s561, %s599 [#allocation8]
                %s602 = scalar_lea.vmem %s572, %s600
              $region81: #{tpu_custom_call.1} parent=75 // loop_footer
                %s586 = sadd.s32 %s584, 1
              $region82: #{tpu_custom_call.1} parent=75 // loop_footer_branch
                %583 = sbr.rel target = $region78
              $region83: #{tpu_custom_call.1} parent=75 // loop_exit
                _
              %s603 = sshrl.u32 %s568, 1
              %s604 = sand.u32 %s568, 1
              %s605 = smul.u32 %s603, 2
              %s606 = smul.u32 8, %s605
              %s607 = scalar_lea.vmem %s561, %s606 [#allocation8]
              %s608 = smul.u32 8, %s605
              %s609 = scalar_lea.vmem %s572, %s608
              // While loop
              $region84: #{tpu_custom_call.1} parent=75 // loop_pre_header
                _
              $region85: #{tpu_custom_call.1} parent=75 // loop_header
                %s611 = sphi 0, %s613
                %p612 = scmp.ge.s32.totalorder %s611, %s604
                %s616 = sphi 0, %s623
                %s617 = sphi %s607, %s626
                %s618 = sphi %s609, %s627
              $region86: #{tpu_custom_call.1} parent=75 // loop_header_branch
                %615 = sbr.rel (%p612) target = $region90
              $region87: #{tpu_custom_call.1} parent=75 // loop_body
                %v619 = vld [vmem:[%s617] sm:%s581]
                %620 = vst [vmem:[%s618] sm:%s581] %v619
                %s621 = sadd.s32 1, %s616
                %p622 = scmp.ge.s32.totalorder %s621, %s604
                %s623 = scalar_select %p622, 0, %s621
                %s624 = smul.u32 %s623, 8
                %s625 = smul.u32 %s623, 8
                %s626 = scalar_lea.vmem %s607, %s624 [#allocation8]
                %s627 = scalar_lea.vmem %s609, %s625
              $region88: #{tpu_custom_call.1} parent=75 // loop_footer
                %s613 = sadd.s32 %s611, 1
              $region89: #{tpu_custom_call.1} parent=75 // loop_footer_branch
                %610 = sbr.rel target = $region85
              $region90: #{tpu_custom_call.1} parent=75 // loop_exit
                _
            $region76: #{tpu_custom_call.1} parent=67 // pred_fallthru
              _
          $region68: #{tpu_custom_call.1} parent=63 // pred_fallthru
            _
          %678 = vnop
        $region64: #{tpu_custom_call.1} parent=47 // pred_fallthru
          _
      $region48: #{tpu_custom_call.1} parent=5 // pred_fallthru
        _
      %p679 = scmp.le.s32.totalorder 2, %s19
      // Predicated region
      $region113: #{tpu_custom_call.1} parent=5 // pred_check
        %p680 = pneg %p679
      $region114: #{tpu_custom_call.1} parent=5 // pred_check_branch
        %682 = sbr.rel (%p680) target = $region116
      $region115: #{tpu_custom_call.1} parent=5 // pred_region
        %s683 = ssub.s32 %s19, 2
        // Predicated region
        $region117: #{tpu_custom_call.1} parent=115 // pred_check
          %p684 = pneg %p200
        $region118: #{tpu_custom_call.1} parent=115 // pred_check_branch
          %686 = sbr.rel (%p684) target = $region120
        $region119: #{tpu_custom_call.1} parent=115 // pred_region
          %s687 = sand.u32 %s185, 1
          %s688 = sand.u32 %s185, 1
          %s689 = smul.addr %s688, 16
          %s690 = scalar_lea.vmem [#allocation8], %s689
        $region120: #{tpu_custom_call.1} parent=115 // pred_fallthru
          _
      $region116: #{tpu_custom_call.1} parent=5 // pred_fallthru
        _
    $region6: #{tpu_custom_call.1} parent=1 // loop_footer
      %s23 = sadd.s32 1, %s19
    $region7: #{tpu_custom_call.1} parent=1 // loop_footer_branch
      %18 = sbr.rel target = $region3
    $region8: #{tpu_custom_call.1} parent=1 // loop_exit
      _
    %691 = vsyncpa [#allocation4], 1
    %s692 = scalar_lea.sflag [#allocation4], 1
    %693 = vsyncpa %s692, 1
    %694 = vsyncpa [#allocation6], 1

</llo_original>
